<compile_context>
chip_gen: v6e
topology: v6e:2x2x1
jax: 0.10.0
libtpu: 0.0.40
codegen_flags: <defaults>
</compile_context>

<pallas_src>
import jax
import jax.numpy as jnp
from jax.experimental import pallas as pl
from jax.experimental.pallas import tpu as pltpu


# ---------------------------------------------------------------------------
# Fused Pallas kernel
# ---------------------------------------------------------------------------

def _vmem_spec():
    # Whole-array-in-VMEM spec (all operands here are tiny; no grid tiling).
    return pl.BlockSpec(memory_space=pltpu.MemorySpace.VMEM)


def _make_fused_kernel(depth, seg_bounds, feat_dim, out_dim):
    """Builds the fused HRLEncoder kernel.

    Ref layout (all whole-array VMEM, inputs then output):
      refs[0]                        x          [n0, feat]
      refs[1 : 1+depth]              A_i        [n_{i+1}, n_i]
      refs[1+depth : 1+5*depth]      (W1', b1', W2', b2') per layer (BN folded)
      refs[1+5*depth]                align_w    [feat*(depth+1), out_dim]
      refs[2+5*depth]                align_b    [1, out_dim]
      refs[3+5*depth]                out        [num_graphs, out_dim]
    """
    num_graphs = len(seg_bounds[0]) - 1

    def kernel(*refs):
        x_ref = refs[0]
        adj_refs = refs[1:1 + depth]
        w_refs = refs[1 + depth:1 + 5 * depth]
        aw_ref = refs[1 + 5 * depth]
        ab_ref = refs[2 + 5 * depth]
        o_ref = refs[3 + 5 * depth]

        # ---- HRLConv stack (Python-unrolled; depth is static) -------------
        x = x_ref[...]
        feats = [x]                      # link_input=True: input level pooled too
        for i in range(depth):
            w1 = w_refs[4 * i][...]
            b1 = w_refs[4 * i + 1][...]
            w2 = w_refs[4 * i + 2][...]
            b2 = w_refs[4 * i + 3][...]
            # scatter-add aggregation as a dense adjacency matmul
            agg = jnp.dot(adj_refs[i][...], x, preferred_element_type=jnp.float32)
            # Lin -> (folded BN) -> ReLU, twice
            h = jnp.maximum(
                jnp.dot(agg, w1, preferred_element_type=jnp.float32) + b1, 0.0)
            x = jnp.maximum(
                jnp.dot(h, w2, preferred_element_type=jnp.float32) + b2, 0.0)
            feats.append(x)

        # ---- sum-pool each level and accumulate straight into the output --
        aw = aw_ref[...]
        acc = jnp.zeros((num_graphs, out_dim), dtype=jnp.float32)
        for i, xi in enumerate(feats):
            bounds = seg_bounds[i]
            # global_add_pool over a sorted batch vector == contiguous row sums
            rows = [
                jnp.sum(xi[bounds[g]:bounds[g + 1], :], axis=0, keepdims=True)
                for g in range(num_graphs)
            ]
            pooled = rows[0] if num_graphs == 1 else jnp.concatenate(rows, axis=0)
            # per-segment slice of the dim_align weight (replaces concat+Linear)
            w_seg = aw[i * feat_dim:(i + 1) * feat_dim, :]
            acc = acc + jnp.dot(pooled, w_seg, preferred_element_type=jnp.float32)

        o_ref[...] = acc + ab_ref[...]

    return kernel


def hrl_encoder_forward(x, adjs, seg_bounds, layer_params, align_w, align_b):
    """Fused HRLEncoder forward (sum pooling, link_input=True, drop_root=False)."""
    depth = len(adjs)
    feat_dim = x.shape[1]
    out_dim = align_w.shape[1]
    num_graphs = len(seg_bounds[0]) - 1

    # Fold eval-mode BN (scale s, shift t) and the Linear bias into the weights:
    #   relu((a @ W + b) * s + t) == relu(a @ (W * s) + (b * s + t))
    folded = []
    for (w1, b1, s1, t1, w2, b2, s2, t2) in layer_params:
        folded.extend([w1 * s1, b1 * s1 + t1, w2 * s2, b2 * s2 + t2])

    inputs = [x] + list(adjs) + folded + [align_w, align_b]
    kernel = _make_fused_kernel(depth, seg_bounds, feat_dim, out_dim)
    return pl.pallas_call(
        kernel,
        out_shape=jax.ShapeDtypeStruct((num_graphs, out_dim), jnp.float32),
        in_specs=[_vmem_spec()] * len(inputs),
        out_specs=_vmem_spec(),
    )(*inputs)


# ---------------------------------------------------------------------------
# Pure-JAX reference (un-folded BN, one-hot pooling) for correctness check only.
# ---------------------------------------------------------------------------

def hrl_encoder_reference(x, adjs, batches, layer_params, align_w, align_b):
    xs = [x]
    for adj, (w1, b1, s1, t1, w2, b2, s2, t2) in zip(adjs, layer_params):
        agg = adj @ x
        h = jnp.maximum((agg @ w1 + b1) * s1 + t1, 0.0)
        x = jnp.maximum((h @ w2 + b2) * s2 + t2, 0.0)
        xs.append(x)
    pooled = [p @ xi for p, xi in zip(batches, xs)]
    return jnp.concatenate(pooled, axis=1) @ align_w + align_b


# ---------------------------------------------------------------------------
# Deterministic synthetic parameters / data
# ---------------------------------------------------------------------------

def make_layer_params(key, in_dim, hid, with_bn):
    ks = jax.random.split(key, 12)
    w1 = jax.random.normal(ks[0], (in_dim, hid), jnp.float32) * 0.1
    b1 = jax.random.normal(ks[1], (1, hid), jnp.float32) * 0.05
    w2 = jax.random.normal(ks[2], (hid, hid), jnp.float32) * 0.1
    b2 = jax.random.normal(ks[3], (1, hid), jnp.float32) * 0.05
    if with_bn:
        # Eval-mode BN (gamma, beta, running_mean, running_var) as scale/shift.
        def bn_fold(kg, kb, km):
            gamma = 1.0 + 0.1 * jax.random.normal(kg, (1, hid), jnp.float32)
            beta = 0.05 * jax.random.normal(kb, (1, hid), jnp.float32)
            mean = 0.1 * jax.random.normal(km, (1, hid), jnp.float32)
            var = jnp.ones((1, hid), jnp.float32) * 1.2
            scale = gamma / jnp.sqrt(var + 1e-5)
            shift = beta - mean * scale
            return scale, shift
        s1, t1 = bn_fold(ks[4], ks[5], ks[6])
        s2, t2 = bn_fold(ks[7], ks[8], ks[9])
    else:
        s1 = s2 = jnp.ones((1, hid), jnp.float32)
        t1 = t2 = jnp.zeros((1, hid), jnp.float32)
    return (w1, b1, s1, t1, w2, b2, s2, t2)


def one_hot_assignment(assign, num_targets):
    """Dense [num_targets, num_sources] matrix with M[assign[j], j] = 1."""
    return (jnp.arange(num_targets)[:, None] == assign[None, :]).astype(jnp.float32)


def seg_boundaries(batch_list, num_graphs):
    """Row boundaries per graph for a sorted batch vector (python ints)."""
    bounds = [0]
    for g in range(num_graphs):
        bounds.append(bounds[-1] + sum(1 for b in batch_list if b == g))
    return bounds


if __name__ == "__main__":
    # Config (small, consistent with the module):
    tree_depth = 3          # num_convs
    hidden_dim = 32         # num_features == nhid
    output_dim = 16         # structure_encoder.output_dim
    num_graphs = 2
    # Tree layer node counts: 16 leaves -> 8 -> 4 -> 2 roots (one per graph).
    layer_sizes = [16, 8, 4, 2]

    key = jax.random.PRNGKey(0)
    k_x, k_p, k_a = jax.random.split(key, 3)

    # Input node features  x: [16, 32]
    x = jax.random.normal(k_x, (layer_sizes[0], hidden_dim), jnp.float32)

    # Edge structure: node j in layer i has parent j // 2 in layer i+1.
    adjs = []
    for i in range(tree_depth):
        parents = jnp.arange(layer_sizes[i]) // 2
        adjs.append(one_hot_assignment(parents, layer_sizes[i + 1]))

    # Graph-membership ("batch") vectors per level (sorted, as in PyG batching).
    batch_ids = [
        [0] * 8 + [1] * 8,   # level 0 (input)
        [0] * 4 + [1] * 4,   # level 1
        [0, 0, 1, 1],        # level 2
        [0, 1],              # level 3 (roots)
    ]
    seg_bounds = [seg_boundaries(b, num_graphs) for b in batch_ids]
    batches = [one_hot_assignment(jnp.array(b, jnp.int32), num_graphs)
               for b in batch_ids]   # only used by the pure-JAX reference

    # Conv MLP parameters: first (tree_depth - 1) layers use BN, last one does not.
    layer_params = []
    pkeys = jax.random.split(k_p, tree_depth)
    in_dim = hidden_dim
    for i in range(tree_depth):
        with_bn = i < tree_depth - 1
        layer_params.append(make_layer_params(pkeys[i], in_dim, hidden_dim, with_bn))
        in_dim = hidden_dim

    # dim_align: Linear(hidden_dim * tree_depth + hidden_dim, output_dim)
    init_dim = hidden_dim * tree_depth + hidden_dim   # link_input=True, drop_root=False
    ak1, ak2 = jax.random.split(k_a)
    align_w = jax.random.normal(ak1, (init_dim, output_dim), jnp.float32) * 0.05
    align_b = jax.random.normal(ak2, (1, output_dim), jnp.float32) * 0.05

    out = hrl_encoder_forward(x, adjs, seg_bounds, layer_params, align_w, align_b)
    out = jax.block_until_ready(out)

    ref = hrl_encoder_reference(x, adjs, batches, layer_params, align_w, align_b)
    assert out.shape == (num_graphs, output_dim), out.shape
    assert jnp.allclose(out, ref, atol=1e-4, rtol=1e-4), "mismatch vs reference"

    print("KERNEL_OK")
</pallas_src>

<mosaic_0001>
module attributes {stable_mosaic.version = 11 : i64} {
  func.func @kernel(%arg0: memref<16x32xf32, #tpu.memory_space<vmem>>, %arg1: memref<8x16xf32, #tpu.memory_space<vmem>>, %arg2: memref<4x8xf32, #tpu.memory_space<vmem>>, %arg3: memref<2x4xf32, #tpu.memory_space<vmem>>, %arg4: memref<32x32xf32, #tpu.memory_space<vmem>>, %arg5: memref<1x32xf32, #tpu.memory_space<vmem>>, %arg6: memref<32x32xf32, #tpu.memory_space<vmem>>, %arg7: memref<1x32xf32, #tpu.memory_space<vmem>>, %arg8: memref<32x32xf32, #tpu.memory_space<vmem>>, %arg9: memref<1x32xf32, #tpu.memory_space<vmem>>, %arg10: memref<32x32xf32, #tpu.memory_space<vmem>>, %arg11: memref<1x32xf32, #tpu.memory_space<vmem>>, %arg12: memref<32x32xf32, #tpu.memory_space<vmem>>, %arg13: memref<1x32xf32, #tpu.memory_space<vmem>>, %arg14: memref<32x32xf32, #tpu.memory_space<vmem>>, %arg15: memref<1x32xf32, #tpu.memory_space<vmem>>, %arg16: memref<128x16xf32, #tpu.memory_space<vmem>>, %arg17: memref<1x16xf32, #tpu.memory_space<vmem>>, %arg18: memref<2x16xf32, #tpu.memory_space<vmem>>) attributes {dimension_semantics = [], scalar_prefetch = 0 : i64, scratch_operands = 0 : i64, tpu.core_type = #tpu.core_type<tc>} {
    %c0 = arith.constant 0 : index
    %c0_0 = arith.constant 0 : index
    %0 = vector.load %arg0[%c0, %c0_0] : memref<16x32xf32, #tpu.memory_space<vmem>>, vector<16x32xf32>
    %c0_1 = arith.constant 0 : index
    %c0_2 = arith.constant 0 : index
    %1 = vector.load %arg4[%c0_1, %c0_2] : memref<32x32xf32, #tpu.memory_space<vmem>>, vector<32x32xf32>
    %c0_3 = arith.constant 0 : index
    %c0_4 = arith.constant 0 : index
    %2 = vector.load %arg5[%c0_3, %c0_4] : memref<1x32xf32, #tpu.memory_space<vmem>>, vector<1x32xf32>
    %c0_5 = arith.constant 0 : index
    %c0_6 = arith.constant 0 : index
    %3 = vector.load %arg6[%c0_5, %c0_6] : memref<32x32xf32, #tpu.memory_space<vmem>>, vector<32x32xf32>
    %c0_7 = arith.constant 0 : index
    %c0_8 = arith.constant 0 : index
    %4 = vector.load %arg7[%c0_7, %c0_8] : memref<1x32xf32, #tpu.memory_space<vmem>>, vector<1x32xf32>
    %c0_9 = arith.constant 0 : index
    %c0_10 = arith.constant 0 : index
    %5 = vector.load %arg1[%c0_9, %c0_10] : memref<8x16xf32, #tpu.memory_space<vmem>>, vector<8x16xf32>
    %cst = arith.constant dense<0.000000e+00> : vector<8x32xf32>
    %6 = tpu.matmul %5, %0, %cst {dimension_numbers = #tpu.dot_dimension_numbers<[1], [0], [0], [1], [0, 0, 1, 1], [], []>} : vector<8x16xf32>, vector<16x32xf32>, vector<8x32xf32> -> vector<8x32xf32>
    %cst_11 = arith.constant dense<0.000000e+00> : vector<8x32xf32>
    %7 = tpu.matmul %6, %1, %cst_11 {dimension_numbers = #tpu.dot_dimension_numbers<[1], [0], [0], [1], [0, 0, 1, 1], [], []>} : vector<8x32xf32>, vector<32x32xf32>, vector<8x32xf32> -> vector<8x32xf32>
    %8 = vector.broadcast %2 : vector<1x32xf32> to vector<8x32xf32>
    %9 = arith.addf %7, %8 : vector<8x32xf32>
    %cst_12 = arith.constant 0.000000e+00 : f32
    %10 = vector.broadcast %cst_12 : f32 to vector<8x32xf32>
    %11 = arith.maximumf %9, %10 : vector<8x32xf32>
    %cst_13 = arith.constant dense<0.000000e+00> : vector<8x32xf32>
    %12 = tpu.matmul %11, %3, %cst_13 {dimension_numbers = #tpu.dot_dimension_numbers<[1], [0], [0], [1], [0, 0, 1, 1], [], []>} : vector<8x32xf32>, vector<32x32xf32>, vector<8x32xf32> -> vector<8x32xf32>
    %13 = vector.broadcast %4 : vector<1x32xf32> to vector<8x32xf32>
    %14 = arith.addf %12, %13 : vector<8x32xf32>
    %cst_14 = arith.constant 0.000000e+00 : f32
    %15 = vector.broadcast %cst_14 : f32 to vector<8x32xf32>
    %16 = arith.maximumf %14, %15 : vector<8x32xf32>
    %c0_15 = arith.constant 0 : index
    %c0_16 = arith.constant 0 : index
    %17 = vector.load %arg8[%c0_15, %c0_16] : memref<32x32xf32, #tpu.memory_space<vmem>>, vector<32x32xf32>
    %c0_17 = arith.constant 0 : index
    %c0_18 = arith.constant 0 : index
    %18 = vector.load %arg9[%c0_17, %c0_18] : memref<1x32xf32, #tpu.memory_space<vmem>>, vector<1x32xf32>
    %c0_19 = arith.constant 0 : index
    %c0_20 = arith.constant 0 : index
    %19 = vector.load %arg10[%c0_19, %c0_20] : memref<32x32xf32, #tpu.memory_space<vmem>>, vector<32x32xf32>
    %c0_21 = arith.constant 0 : index
    %c0_22 = arith.constant 0 : index
    %20 = vector.load %arg11[%c0_21, %c0_22] : memref<1x32xf32, #tpu.memory_space<vmem>>, vector<1x32xf32>
    %c0_23 = arith.constant 0 : index
    %c0_24 = arith.constant 0 : index
    %21 = vector.load %arg2[%c0_23, %c0_24] : memref<4x8xf32, #tpu.memory_space<vmem>>, vector<4x8xf32>
    %cst_25 = arith.constant dense<0.000000e+00> : vector<4x32xf32>
    %22 = tpu.matmul %21, %16, %cst_25 {dimension_numbers = #tpu.dot_dimension_numbers<[1], [0], [0], [1], [0, 0, 1, 1], [], []>} : vector<4x8xf32>, vector<8x32xf32>, vector<4x32xf32> -> vector<4x32xf32>
    %cst_26 = arith.constant dense<0.000000e+00> : vector<4x32xf32>
    %23 = tpu.matmul %22, %17, %cst_26 {dimension_numbers = #tpu.dot_dimension_numbers<[1], [0], [0], [1], [0, 0, 1, 1], [], []>} : vector<4x32xf32>, vector<32x32xf32>, vector<4x32xf32> -> vector<4x32xf32>
    %24 = vector.broadcast %18 : vector<1x32xf32> to vector<4x32xf32>
    %25 = arith.addf %23, %24 : vector<4x32xf32>
    %cst_27 = arith.constant 0.000000e+00 : f32
    %26 = vector.broadcast %cst_27 : f32 to vector<4x32xf32>
    %27 = arith.maximumf %25, %26 : vector<4x32xf32>
    %cst_28 = arith.constant dense<0.000000e+00> : vector<4x32xf32>
    %28 = tpu.matmul %27, %19, %cst_28 {dimension_numbers = #tpu.dot_dimension_numbers<[1], [0], [0], [1], [0, 0, 1, 1], [], []>} : vector<4x32xf32>, vector<32x32xf32>, vector<4x32xf32> -> vector<4x32xf32>
    %29 = vector.broadcast %20 : vector<1x32xf32> to vector<4x32xf32>
    %30 = arith.addf %28, %29 : vector<4x32xf32>
    %cst_29 = arith.constant 0.000000e+00 : f32
    %31 = vector.broadcast %cst_29 : f32 to vector<4x32xf32>
    %32 = arith.maximumf %30, %31 : vector<4x32xf32>
    %c0_30 = arith.constant 0 : index
    %c0_31 = arith.constant 0 : index
    %33 = vector.load %arg12[%c0_30, %c0_31] : memref<32x32xf32, #tpu.memory_space<vmem>>, vector<32x32xf32>
    %c0_32 = arith.constant 0 : index
    %c0_33 = arith.constant 0 : index
    %34 = vector.load %arg13[%c0_32, %c0_33] : memref<1x32xf32, #tpu.memory_space<vmem>>, vector<1x32xf32>
    %c0_34 = arith.constant 0 : index
    %c0_35 = arith.constant 0 : index
    %35 = vector.load %arg14[%c0_34, %c0_35] : memref<32x32xf32, #tpu.memory_space<vmem>>, vector<32x32xf32>
    %c0_36 = arith.constant 0 : index
    %c0_37 = arith.constant 0 : index
    %36 = vector.load %arg15[%c0_36, %c0_37] : memref<1x32xf32, #tpu.memory_space<vmem>>, vector<1x32xf32>
    %c0_38 = arith.constant 0 : index
    %c0_39 = arith.constant 0 : index
    %37 = vector.load %arg3[%c0_38, %c0_39] : memref<2x4xf32, #tpu.memory_space<vmem>>, vector<2x4xf32>
    %cst_40 = arith.constant dense<0.000000e+00> : vector<2x32xf32>
    %38 = tpu.matmul %37, %32, %cst_40 {dimension_numbers = #tpu.dot_dimension_numbers<[1], [0], [0], [1], [0, 0, 1, 1], [], []>} : vector<2x4xf32>, vector<4x32xf32>, vector<2x32xf32> -> vector<2x32xf32>
    %cst_41 = arith.constant dense<0.000000e+00> : vector<2x32xf32>
    %39 = tpu.matmul %38, %33, %cst_41 {dimension_numbers = #tpu.dot_dimension_numbers<[1], [0], [0], [1], [0, 0, 1, 1], [], []>} : vector<2x32xf32>, vector<32x32xf32>, vector<2x32xf32> -> vector<2x32xf32>
    %40 = vector.broadcast %34 : vector<1x32xf32> to vector<2x32xf32>
    %41 = arith.addf %39, %40 : vector<2x32xf32>
    %cst_42 = arith.constant 0.000000e+00 : f32
    %42 = vector.broadcast %cst_42 : f32 to vector<2x32xf32>
    %43 = arith.maximumf %41, %42 : vector<2x32xf32>
    %cst_43 = arith.constant dense<0.000000e+00> : vector<2x32xf32>
    %44 = tpu.matmul %43, %35, %cst_43 {dimension_numbers = #tpu.dot_dimension_numbers<[1], [0], [0], [1], [0, 0, 1, 1], [], []>} : vector<2x32xf32>, vector<32x32xf32>, vector<2x32xf32> -> vector<2x32xf32>
    %45 = vector.broadcast %36 : vector<1x32xf32> to vector<2x32xf32>
    %46 = arith.addf %44, %45 : vector<2x32xf32>
    %cst_44 = arith.constant 0.000000e+00 : f32
    %47 = vector.broadcast %cst_44 : f32 to vector<2x32xf32>
    %48 = arith.maximumf %46, %47 : vector<2x32xf32>
    %c0_45 = arith.constant 0 : index
    %c0_46 = arith.constant 0 : index
    %49 = vector.load %arg16[%c0_45, %c0_46] : memref<128x16xf32, #tpu.memory_space<vmem>>, vector<128x16xf32>
    %cst_47 = arith.constant 0.000000e+00 : f32
    %50 = vector.broadcast %cst_47 : f32 to vector<2x16xf32>
    %51 = vector.extract_strided_slice %0 {offsets = [0, 0], sizes = [8, 32], strides = [1, 1]} : vector<16x32xf32> to vector<8x32xf32>
    %cst_48 = arith.constant dense<0.000000e+00> : vector<32xf32>
    %52 = vector.multi_reduction <add>, %51, %cst_48 [0] : vector<8x32xf32> to vector<32xf32>
    %53 = vector.shape_cast %52 : vector<32xf32> to vector<1x32xf32>
    %54 = vector.extract_strided_slice %0 {offsets = [8, 0], sizes = [8, 32], strides = [1, 1]} : vector<16x32xf32> to vector<8x32xf32>
    %cst_49 = arith.constant dense<0.000000e+00> : vector<32xf32>
    %55 = vector.multi_reduction <add>, %54, %cst_49 [0] : vector<8x32xf32> to vector<32xf32>
    %56 = vector.shape_cast %55 : vector<32xf32> to vector<1x32xf32>
    %57 = tpu.concatenate %53, %56 in 0 : vector<1x32xf32>, vector<1x32xf32> -> vector<2x32xf32>
    %58 = vector.extract_strided_slice %49 {offsets = [0, 0], sizes = [32, 16], strides = [1, 1]} : vector<128x16xf32> to vector<32x16xf32>
    %cst_50 = arith.constant dense<0.000000e+00> : vector<2x16xf32>
    %59 = tpu.matmul %57, %58, %cst_50 {dimension_numbers = #tpu.dot_dimension_numbers<[1], [0], [0], [1], [0, 0, 1, 1], [], []>} : vector<2x32xf32>, vector<32x16xf32>, vector<2x16xf32> -> vector<2x16xf32>
    %60 = arith.addf %50, %59 : vector<2x16xf32>
    %61 = vector.extract_strided_slice %16 {offsets = [0, 0], sizes = [4, 32], strides = [1, 1]} : vector<8x32xf32> to vector<4x32xf32>
    %cst_51 = arith.constant dense<0.000000e+00> : vector<32xf32>
    %62 = vector.multi_reduction <add>, %61, %cst_51 [0] : vector<4x32xf32> to vector<32xf32>
    %63 = vector.shape_cast %62 : vector<32xf32> to vector<1x32xf32>
    %64 = vector.extract_strided_slice %16 {offsets = [4, 0], sizes = [4, 32], strides = [1, 1]} : vector<8x32xf32> to vector<4x32xf32>
    %cst_52 = arith.constant dense<0.000000e+00> : vector<32xf32>
    %65 = vector.multi_reduction <add>, %64, %cst_52 [0] : vector<4x32xf32> to vector<32xf32>
    %66 = vector.shape_cast %65 : vector<32xf32> to vector<1x32xf32>
    %67 = tpu.concatenate %63, %66 in 0 : vector<1x32xf32>, vector<1x32xf32> -> vector<2x32xf32>
    %68 = vector.extract_strided_slice %49 {offsets = [32, 0], sizes = [32, 16], strides = [1, 1]} : vector<128x16xf32> to vector<32x16xf32>
    %cst_53 = arith.constant dense<0.000000e+00> : vector<2x16xf32>
    %69 = tpu.matmul %67, %68, %cst_53 {dimension_numbers = #tpu.dot_dimension_numbers<[1], [0], [0], [1], [0, 0, 1, 1], [], []>} : vector<2x32xf32>, vector<32x16xf32>, vector<2x16xf32> -> vector<2x16xf32>
    %70 = arith.addf %60, %69 : vector<2x16xf32>
    %71 = vector.extract_strided_slice %32 {offsets = [0, 0], sizes = [2, 32], strides = [1, 1]} : vector<4x32xf32> to vector<2x32xf32>
    %cst_54 = arith.constant dense<0.000000e+00> : vector<32xf32>
    %72 = vector.multi_reduction <add>, %71, %cst_54 [0] : vector<2x32xf32> to vector<32xf32>
    %73 = vector.shape_cast %72 : vector<32xf32> to vector<1x32xf32>
    %74 = vector.extract_strided_slice %32 {offsets = [2, 0], sizes = [2, 32], strides = [1, 1]} : vector<4x32xf32> to vector<2x32xf32>
    %cst_55 = arith.constant dense<0.000000e+00> : vector<32xf32>
    %75 = vector.multi_reduction <add>, %74, %cst_55 [0] : vector<2x32xf32> to vector<32xf32>
    %76 = vector.shape_cast %75 : vector<32xf32> to vector<1x32xf32>
    %77 = tpu.concatenate %73, %76 in 0 : vector<1x32xf32>, vector<1x32xf32> -> vector<2x32xf32>
    %78 = vector.extract_strided_slice %49 {offsets = [64, 0], sizes = [32, 16], strides = [1, 1]} : vector<128x16xf32> to vector<32x16xf32>
    %cst_56 = arith.constant dense<0.000000e+00> : vector<2x16xf32>
    %79 = tpu.matmul %77, %78, %cst_56 {dimension_numbers = #tpu.dot_dimension_numbers<[1], [0], [0], [1], [0, 0, 1, 1], [], []>} : vector<2x32xf32>, vector<32x16xf32>, vector<2x16xf32> -> vector<2x16xf32>
    %80 = arith.addf %70, %79 : vector<2x16xf32>
    %81 = vector.extract_strided_slice %48 {offsets = [0, 0], sizes = [1, 32], strides = [1, 1]} : vector<2x32xf32> to vector<1x32xf32>
    %cst_57 = arith.constant dense<0.000000e+00> : vector<32xf32>
    %82 = vector.multi_reduction <add>, %81, %cst_57 [0] : vector<1x32xf32> to vector<32xf32>
    %83 = vector.shape_cast %82 : vector<32xf32> to vector<1x32xf32>
    %84 = vector.extract_strided_slice %48 {offsets = [1, 0], sizes = [1, 32], strides = [1, 1]} : vector<2x32xf32> to vector<1x32xf32>
    %cst_58 = arith.constant dense<0.000000e+00> : vector<32xf32>
    %85 = vector.multi_reduction <add>, %84, %cst_58 [0] : vector<1x32xf32> to vector<32xf32>
    %86 = vector.shape_cast %85 : vector<32xf32> to vector<1x32xf32>
    %87 = tpu.concatenate %83, %86 in 0 : vector<1x32xf32>, vector<1x32xf32> -> vector<2x32xf32>
    %88 = vector.extract_strided_slice %49 {offsets = [96, 0], sizes = [32, 16], strides = [1, 1]} : vector<128x16xf32> to vector<32x16xf32>
    %cst_59 = arith.constant dense<0.000000e+00> : vector<2x16xf32>
    %89 = tpu.matmul %87, %88, %cst_59 {dimension_numbers = #tpu.dot_dimension_numbers<[1], [0], [0], [1], [0, 0, 1, 1], [], []>} : vector<2x32xf32>, vector<32x16xf32>, vector<2x16xf32> -> vector<2x16xf32>
    %90 = arith.addf %80, %89 : vector<2x16xf32>
    %c0_60 = arith.constant 0 : index
    %c0_61 = arith.constant 0 : index
    %91 = vector.load %arg17[%c0_60, %c0_61] : memref<1x16xf32, #tpu.memory_space<vmem>>, vector<1x16xf32>
    %92 = vector.broadcast %91 : vector<1x16xf32> to vector<2x16xf32>
    %93 = arith.addf %90, %92 : vector<2x16xf32>
    %c0_62 = arith.constant 0 : index
    %c0_63 = arith.constant 0 : index
    %94 = vector.load %arg18[%c0_62, %c0_63] : memref<2x16xf32, #tpu.memory_space<vmem>>, vector<2x16xf32>
    tpu.vector_store %arg18[%c0_62, %c0_63], %93 {strides = array<i32>} : memref<2x16xf32, #tpu.memory_space<vmem>>, vector<2x16xf32>,
    return
  }
}

</mosaic_0001>

<llo_original>
// kernel: tpu_custom_call.1
$region0: #{tpu_custom_call.1}
  #allocation0 [shape = 'u32[]', space=smem, size = 0x4, offset = 0x4, fixed_abs, tag = 'smem constant byte address 0x4 - core index']
  #allocation1 [shape = 'u32[144,128]{1,0:T(1,128)}', space=vmem, size = 0x12000, scoped, tag = 'internal scratch']
  %s0 = inlined_call_operand.hbm [shape: f32[16,32], index: 0, kind: input, shape index: {}]
  %s1 = inlined_call_operand.hbm [shape: f32[8,16], index: 1, kind: input, shape index: {}]
  %s2 = inlined_call_operand.hbm [shape: f32[4,8], index: 2, kind: input, shape index: {}]
  %s3 = inlined_call_operand.hbm [shape: f32[2,4], index: 3, kind: input, shape index: {}]
  %s4 = inlined_call_operand.vmem [shape: f32[32,32], index: 4, kind: input, shape index: {}]
  %s5 = inlined_call_operand.hbm [shape: f32[1,32], index: 5, kind: input, shape index: {}]
  %s6 = inlined_call_operand.vmem [shape: f32[32,32], index: 6, kind: input, shape index: {}]
  %s7 = inlined_call_operand.hbm [shape: f32[1,32], index: 7, kind: input, shape index: {}]
  %s8 = inlined_call_operand.vmem [shape: f32[32,32], index: 8, kind: input, shape index: {}]
  %s9 = inlined_call_operand.hbm [shape: f32[1,32], index: 9, kind: input, shape index: {}]
  %s10 = inlined_call_operand.vmem [shape: f32[32,32], index: 10, kind: input, shape index: {}]
  %s11 = inlined_call_operand.vmem [shape: f32[1,32], index: 11, kind: input, shape index: {}]
  %s12 = inlined_call_operand.vmem [shape: f32[32,32], index: 12, kind: input, shape index: {}]
  %s13 = inlined_call_operand.vmem [shape: f32[1,32], index: 13, kind: input, shape index: {}]
  %s14 = inlined_call_operand.hbm [shape: f32[32,32], index: 14, kind: input, shape index: {}]
  %s15 = inlined_call_operand.vmem [shape: f32[1,32], index: 15, kind: input, shape index: {}]
  %s16 = inlined_call_operand.vmem [shape: f32[128,16], index: 16, kind: input, shape index: {}]
  %s17 = inlined_call_operand.vmem [shape: f32[1,16], index: 17, kind: input, shape index: {}]
  %s18 = inlined_call_operand.hbm [shape: f32[2,16], index: 18, kind: output, shape index: {}]
  %s19 = sld [smem:[#allocation0]]
  $region114: #{tpu_custom_call.1} parent=0
    _
  %s21 = ssub.s32 1, %s19
  %s22 = scalar_select 0, %s21, %s19
  $region1: #{tpu_custom_call.1} parent=0
    #allocation2 [shape = 'u8[8192]{0}', space=vmem, size = 0x2000, scoped, tag = 'input window, operand 0, single buffered']
    #allocation3 [shape = 's32[1]{0}', space=sflag, size = 0x4, scoped, tag = 'scoped memory for tpu_custom_call.1']
    #allocation4 [shape = 's32[1]{0}', space=sflag, size = 0x4, scoped, tag = 'scoped memory for tpu_custom_call.1']
    #allocation5 [shape = 'u8[4096]{0}', space=vmem, size = 0x1000, scoped, tag = 'input window, operand 1, single buffered']
    #allocation6 [shape = 's32[1]{0}', space=sflag, size = 0x4, scoped, tag = 'scoped memory for tpu_custom_call.1']
    #allocation7 [shape = 'u8[2048]{0}', space=vmem, size = 0x800, scoped, tag = 'input window, operand 2, single buffered']
    #allocation8 [shape = 'u8[1024]{0}', space=vmem, size = 0x400, scoped, tag = 'input window, operand 3, single buffered']
    #allocation9 [shape = 's32[1]{0}', space=sflag, size = 0x4, scoped, tag = 'scoped memory for tpu_custom_call.1']
    #allocation10 [shape = 'u8[512]{0}', space=vmem, size = 0x400, scoped, tag = 'input window, operand 5, single buffered']
    #allocation11 [shape = 'u8[512]{0}', space=vmem, size = 0x400, scoped, tag = 'input window, operand 7, single buffered']
    #allocation12 [shape = 's32[1]{0}', space=sflag, size = 0x4, scoped, tag = 'scoped memory for tpu_custom_call.1']
    #allocation13 [shape = 'u8[512]{0}', space=vmem, size = 0x400, scoped, tag = 'input window, operand 9, single buffered']
    #allocation14 [shape = 'u8[16384]{0}', space=vmem, size = 0x4000, scoped, tag = 'input window, operand 14, single buffered']
    #allocation15 [shape = 's32[1]{0}', space=sflag, size = 0x4, scoped, tag = 'scoped memory for tpu_custom_call.1']
    #allocation16 [shape = 'u8[1024]{0}', space=vmem, size = 0x400, scoped, tag = 'output window, operand 0, single buffered']
    %23 = vsyncpa [#allocation3], 0
    %24 = vsyncpa [#allocation6], 0
    %25 = vsyncpa [#allocation9], 0
    %26 = vsyncpa [#allocation12], 0
    %27 = vsyncpa [#allocation15], 0
    %28 = vsyncpa [#allocation4], 0
    // Predicated region
    $region2: #{tpu_custom_call.1} parent=1 // pred_check
      _
    $region3: #{tpu_custom_call.1} parent=1 // pred_check_branch
      %30 = sbr.rel (0) target = $region5
    $region4: #{tpu_custom_call.1} parent=1 // pred_region
      %s32 = ssub.s32 256, 256
      %33 = vsyncadd [#allocation3], %s32
      %s34 = sshll.u32 [#allocation2], 4
      %s35 = int_to_ptr.vmem [resolvable:$true] %s34
      %40 = dma.hbm_to_vmem [thread:$0]  %s0, 256, %s35, [#allocation3], 128, 128, 8
    $region5: #{tpu_custom_call.1} parent=1 // pred_fallthru
      _
    // Predicated region
    $region6: #{tpu_custom_call.1} parent=1 // pred_check
      _
    $region7: #{tpu_custom_call.1} parent=1 // pred_check_branch
      %42 = sbr.rel (0) target = $region9
    $region8: #{tpu_custom_call.1} parent=1 // pred_region
      %s44 = ssub.s32 128, 128
      %45 = vsyncadd [#allocation6], %s44
      %s47 = sshll.u32 [#allocation5], 4
      %s48 = int_to_ptr.vmem [resolvable:$true] %s47
      %50 = dma.hbm_to_vmem [thread:$0]  %s1, 128, %s48, [#allocation6]
    $region9: #{tpu_custom_call.1} parent=1 // pred_fallthru
      _
    // Predicated region
    $region10: #{tpu_custom_call.1} parent=1 // pred_check
      _
    $region11: #{tpu_custom_call.1} parent=1 // pred_check_branch
      %52 = sbr.rel (0) target = $region13
    $region12: #{tpu_custom_call.1} parent=1 // pred_region
      %s54 = ssub.s32 64, 64
      %55 = vsyncadd [#allocation6], %s54
      %s57 = sshll.u32 [#allocation7], 4
      %s58 = int_to_ptr.vmem [resolvable:$true] %s57
      %60 = dma.hbm_to_vmem [thread:$0]  %s2, 64, %s58, [#allocation6]
    $region13: #{tpu_custom_call.1} parent=1 // pred_fallthru
      _
    // Predicated region
    $region14: #{tpu_custom_call.1} parent=1 // pred_check
      _
    $region15: #{tpu_custom_call.1} parent=1 // pred_check_branch
      %62 = sbr.rel (0) target = $region17
    $region16: #{tpu_custom_call.1} parent=1 // pred_region
      %s64 = ssub.s32 32, 32
      %65 = vsyncadd [#allocation9], %s64
      %s67 = sshll.u32 [#allocation8], 4
      %s68 = int_to_ptr.vmem [resolvable:$true] %s67
      %70 = dma.hbm_to_vmem [thread:$0]  %s3, 32, %s68, [#allocation9]
    $region17: #{tpu_custom_call.1} parent=1 // pred_fallthru
      _
    // Predicated region
    $region18: #{tpu_custom_call.1} parent=1 // pred_check
      _
    $region19: #{tpu_custom_call.1} parent=1 // pred_check_branch
      %72 = sbr.rel (0) target = $region21
    $region20: #{tpu_custom_call.1} parent=1 // pred_region
      _
    $region21: #{tpu_custom_call.1} parent=1 // pred_fallthru
      _
    // Predicated region
    $region22: #{tpu_custom_call.1} parent=1 // pred_check
      _
    $region23: #{tpu_custom_call.1} parent=1 // pred_check_branch
      %74 = sbr.rel (0) target = $region25
    $region24: #{tpu_custom_call.1} parent=1 // pred_region
      %s76 = ssub.s32 16, 16
      %77 = vsyncadd [#allocation9], %s76
      %s79 = sshll.u32 [#allocation10], 4
      %s80 = int_to_ptr.vmem [resolvable:$true] %s79
      %82 = dma.hbm_to_vmem [thread:$0]  %s5, 16, %s80, [#allocation9]
    $region25: #{tpu_custom_call.1} parent=1 // pred_fallthru
      _
    // Predicated region
    $region26: #{tpu_custom_call.1} parent=1 // pred_check
      _
    $region27: #{tpu_custom_call.1} parent=1 // pred_check_branch
      %84 = sbr.rel (0) target = $region29
    $region28: #{tpu_custom_call.1} parent=1 // pred_region
      _
    $region29: #{tpu_custom_call.1} parent=1 // pred_fallthru
      _
    // Predicated region
    $region30: #{tpu_custom_call.1} parent=1 // pred_check
      _
    $region31: #{tpu_custom_call.1} parent=1 // pred_check_branch
      %86 = sbr.rel (0) target = $region33
    $region32: #{tpu_custom_call.1} parent=1 // pred_region
      %s88 = ssub.s32 16, 16
      %89 = vsyncadd [#allocation12], %s88
      %s91 = sshll.u32 [#allocation11], 4
      %s92 = int_to_ptr.vmem [resolvable:$true] %s91
      %94 = dma.hbm_to_vmem [thread:$0]  %s7, 16, %s92, [#allocation12]
    $region33: #{tpu_custom_call.1} parent=1 // pred_fallthru
      _
    // Predicated region
    $region34: #{tpu_custom_call.1} parent=1 // pred_check
      _
    $region35: #{tpu_custom_call.1} parent=1 // pred_check_branch
      %96 = sbr.rel (0) target = $region37
    $region36: #{tpu_custom_call.1} parent=1 // pred_region
      _
    $region37: #{tpu_custom_call.1} parent=1 // pred_fallthru
      _
    // Predicated region
    $region38: #{tpu_custom_call.1} parent=1 // pred_check
      _
    $region39: #{tpu_custom_call.1} parent=1 // pred_check_branch
      %98 = sbr.rel (0) target = $region41
    $region40: #{tpu_custom_call.1} parent=1 // pred_region
      %s100 = ssub.s32 16, 16
      %101 = vsyncadd [#allocation12], %s100
      %s103 = sshll.u32 [#allocation13], 4
      %s104 = int_to_ptr.vmem [resolvable:$true] %s103
      %106 = dma.hbm_to_vmem [thread:$0]  %s9, 16, %s104, [#allocation12]
    $region41: #{tpu_custom_call.1} parent=1 // pred_fallthru
      _
    // Predicated region
    $region42: #{tpu_custom_call.1} parent=1 // pred_check
      _
    $region43: #{tpu_custom_call.1} parent=1 // pred_check_branch
      %108 = sbr.rel (0) target = $region45
    $region44: #{tpu_custom_call.1} parent=1 // pred_region
      _
    $region45: #{tpu_custom_call.1} parent=1 // pred_fallthru
      _
    // Predicated region
    $region46: #{tpu_custom_call.1} parent=1 // pred_check
      _
    $region47: #{tpu_custom_call.1} parent=1 // pred_check_branch
      %110 = sbr.rel (0) target = $region49
    $region48: #{tpu_custom_call.1} parent=1 // pred_region
      _
    $region49: #{tpu_custom_call.1} parent=1 // pred_fallthru
      _
    // Predicated region
    $region50: #{tpu_custom_call.1} parent=1 // pred_check
      _
    $region51: #{tpu_custom_call.1} parent=1 // pred_check_branch
      %112 = sbr.rel (0) target = $region53
    $region52: #{tpu_custom_call.1} parent=1 // pred_region
      _
    $region53: #{tpu_custom_call.1} parent=1 // pred_fallthru
      _
    // Predicated region
    $region54: #{tpu_custom_call.1} parent=1 // pred_check
      _
    $region55: #{tpu_custom_call.1} parent=1 // pred_check_branch
      %114 = sbr.rel (0) target = $region57
    $region56: #{tpu_custom_call.1} parent=1 // pred_region
      _
    $region57: #{tpu_custom_call.1} parent=1 // pred_fallthru
      _
    // Predicated region
    $region58: #{tpu_custom_call.1} parent=1 // pred_check
      _
    $region59: #{tpu_custom_call.1} parent=1 // pred_check_branch
      %116 = sbr.rel (0) target = $region61
    $region60: #{tpu_custom_call.1} parent=1 // pred_region
      %s118 = ssub.s32 512, 512
      %119 = vsyncadd [#allocation15], %s118
      %s120 = sshll.u32 [#allocation14], 4
      %s121 = int_to_ptr.vmem [resolvable:$true] %s120
      %126 = dma.hbm_to_vmem [thread:$0]  %s14, 512, %s121, [#allocation15], 128, 128, 8
    $region61: #{tpu_custom_call.1} parent=1 // pred_fallthru
      _
    // Predicated region
    $region62: #{tpu_custom_call.1} parent=1 // pred_check
      _
    $region63: #{tpu_custom_call.1} parent=1 // pred_check_branch
      %128 = sbr.rel (0) target = $region65
    $region64: #{tpu_custom_call.1} parent=1 // pred_region
      _
    $region65: #{tpu_custom_call.1} parent=1 // pred_fallthru
      _
    // Predicated region
    $region66: #{tpu_custom_call.1} parent=1 // pred_check
      _
    $region67: #{tpu_custom_call.1} parent=1 // pred_check_branch
      %130 = sbr.rel (0) target = $region69
    $region68: #{tpu_custom_call.1} parent=1 // pred_region
      _
    $region69: #{tpu_custom_call.1} parent=1 // pred_fallthru
      _
    // Predicated region
    $region70: #{tpu_custom_call.1} parent=1 // pred_check
      _
    $region71: #{tpu_custom_call.1} parent=1 // pred_check_branch
      %132 = sbr.rel (0) target = $region73
    $region72: #{tpu_custom_call.1} parent=1 // pred_region
      _
    $region73: #{tpu_custom_call.1} parent=1 // pred_fallthru
      _
    // Predicated region
    $region74: #{tpu_custom_call.1} parent=1 // pred_check
      _
    $region75: #{tpu_custom_call.1} parent=1 // pred_check_branch
      %134 = sbr.rel (0) target = $region77
    $region76: #{tpu_custom_call.1} parent=1 // pred_region
      %135 = dma.done [#allocation3], 256
    $region77: #{tpu_custom_call.1} parent=1 // pred_fallthru
      _
    // Predicated region
    $region78: #{tpu_custom_call.1} parent=1 // pred_check
      _
    $region79: #{tpu_custom_call.1} parent=1 // pred_check_branch
      %137 = sbr.rel (0) target = $region81
    $region80: #{tpu_custom_call.1} parent=1 // pred_region
      %138 = dma.done [#allocation6], 128
    $region81: #{tpu_custom_call.1} parent=1 // pred_fallthru
      _
    // Predicated region
    $region82: #{tpu_custom_call.1} parent=1 // pred_check
      _
    $region83: #{tpu_custom_call.1} parent=1 // pred_check_branch
      %140 = sbr.rel (0) target = $region85
    $region84: #{tpu_custom_call.1} parent=1 // pred_region
      %141 = dma.done [#allocation6], 64
    $region85: #{tpu_custom_call.1} parent=1 // pred_fallthru
      _
    // Predicated region
    $region86: #{tpu_custom_call.1} parent=1 // pred_check
      _
    $region87: #{tpu_custom_call.1} parent=1 // pred_check_branch
      %143 = sbr.rel (0) target = $region89
    $region88: #{tpu_custom_call.1} parent=1 // pred_region
      %144 = dma.done [#allocation9], 32
    $region89: #{tpu_custom_call.1} parent=1 // pred_fallthru
      _
    // Predicated region
    $region90: #{tpu_custom_call.1} parent=1 // pred_check
      _
    $region91: #{tpu_custom_call.1} parent=1 // pred_check_branch
      %146 = sbr.rel (0) target = $region93
    $region92: #{tpu_custom_call.1} parent=1 // pred_region
      %147 = dma.done [#allocation9], 16
    $region93: #{tpu_custom_call.1} parent=1 // pred_fallthru
      _
    // Predicated region
    $region94: #{tpu_custom_call.1} parent=1 // pred_check
      _
    $region95: #{tpu_custom_call.1} parent=1 // pred_check_branch
      %149 = sbr.rel (0) target = $region97
    $region96: #{tpu_custom_call.1} parent=1 // pred_region
      %150 = dma.done [#allocation12], 16
    $region97: #{tpu_custom_call.1} parent=1 // pred_fallthru
      _
    // Predicated region
    $region98: #{tpu_custom_call.1} parent=1 // pred_check
      _
    $region99: #{tpu_custom_call.1} parent=1 // pred_check_branch
      %152 = sbr.rel (0) target = $region101
    $region100: #{tpu_custom_call.1} parent=1 // pred_region
      %153 = dma.done [#allocation12], 16
    $region101: #{tpu_custom_call.1} parent=1 // pred_fallthru
      _
    // Predicated region
    $region102: #{tpu_custom_call.1} parent=1 // pred_check
      _
    $region103: #{tpu_custom_call.1} parent=1 // pred_check_branch
      %155 = sbr.rel (0) target = $region105
    $region104: #{tpu_custom_call.1} parent=1 // pred_region
      %156 = dma.done [#allocation15], 512
    $region105: #{tpu_custom_call.1} parent=1 // pred_fallthru
      _
    %v157 = vld [vmem:[#allocation2] sm:$0xff]
    %v158 = vld [vmem:[#allocation2 + $0x8] sm:$0xff]
    %v159 = vld [vmem:[%s4] sm:$0xff]
    %v160 = vld [vmem:[%s4 + $0x8] sm:$0xff]
    %v161 = vld [vmem:[%s4 + $0x10] sm:$0xff]
    %v162 = vld [vmem:[%s4 + $0x18] sm:$0xff]
    %v163 = vld [vmem:[#allocation10] sm:$0x1]
    %v164 = vld [vmem:[%s6] sm:$0xff]
    %v165 = vld [vmem:[%s6 + $0x8] sm:$0xff]
    %v166 = vld [vmem:[%s6 + $0x10] sm:$0xff]
    %v167 = vld [vmem:[%s6 + $0x18] sm:$0xff]
    %v168 = vld [vmem:[#allocation11] sm:$0x1]
    %v169 = vld [vmem:[#allocation5] sm:$0xff]
    %vm170 = vcmask 130048
    %v172 = vsel %vm170, %v169, 0
    %174 = vmatprep.subr.mxu0 0.0
    %175 = vmatpush1.msra.mxu0 0.0
    %176 = vmatprep.subr.mxu0 0.0
    %177 = vmatpush1.msra.mxu0 0.0
    %178 = vmatprep.subr.mxu0 0.0
    %179 = vmatpush1.msra.mxu0 0.0
    %180 = vmatprep.subr.mxu0 0.0
    %181 = vmatpush1.msra.mxu0 0.0
    %182 = vmatprep.subr.mxu0 0.0
    %183 = vmatpush1.msra.mxu0 0.0
    %184 = vmatprep.subr.mxu0 0.0
    %185 = vmatpush1.msra.mxu0 0.0
    %186 = vmatprep.subr.mxu0 0.0
    %187 = vmatpush1.msra.mxu0 0.0
    %188 = vmatprep.subr.mxu0 0.0
    %189 = vmatpush1.msra.mxu0 0.0
    %190 = vmatprep.subr.mxu0 0.0
    %191 = vmatpush1.msra.mxu0 0.0
    %192 = vmatprep.subr.mxu0 0.0
    %193 = vmatpush1.msra.mxu0 0.0
    %194 = vmatprep.subr.mxu0 0.0
    %195 = vmatpush1.msra.mxu0 0.0
    %196 = vmatprep.subr.mxu0 0.0
    %197 = vmatpush1.msra.mxu0 0.0
    %198 = vmatprep.subr.mxu0 0.0
    %199 = vmatpush1.msra.mxu0 0.0
    %200 = vmatprep.subr.mxu0 0.0
    %201 = vmatpush1.msra.mxu0 0.0
    %202 = vmatprep.subr.mxu0 0.0
    %203 = vmatpush1.msra.mxu0 %v158
    %204 = vmatprep.subr.mxu0 0.0
    %205 = vmatpush1.msra.mxu0 %v157
    %206 = vmatprep.subr.mxu0 0.0
    %207 = vmatpush2.msra.mxu0 0.0
    %208 = vmatprep.subr.mxu0 0.0
    %209 = vmatpush2.msra.mxu0 0.0
    %210 = vmatprep.subr.mxu0 0.0
    %211 = vmatpush2.msra.mxu0 0.0
    %212 = vmatprep.subr.mxu0 0.0
    %213 = vmatpush2.msra.mxu0 0.0
    %214 = vmatprep.subr.mxu0 0.0
    %215 = vmatpush2.msra.mxu0 0.0
    %216 = vmatprep.subr.mxu0 0.0
    %217 = vmatpush2.msra.mxu0 0.0
    %218 = vmatprep.subr.mxu0 0.0
    %219 = vmatpush2.msra.mxu0 0.0
    %220 = vmatprep.subr.mxu0 0.0
    %221 = vmatpush2.msra.mxu0 0.0
    %222 = vmatprep.subr.mxu0 0.0
    %223 = vmatpush2.msra.mxu0 0.0
    %224 = vmatprep.subr.mxu0 0.0
    %225 = vmatpush2.msra.mxu0 0.0
    %226 = vmatprep.subr.mxu0 0.0
    %227 = vmatpush2.msra.mxu0 0.0
    %228 = vmatprep.subr.mxu0 0.0
    %229 = vmatpush2.msra.mxu0 0.0
    %230 = vmatprep.subr.mxu0 0.0
    %231 = vmatpush2.msra.mxu0 0.0
    %232 = vmatprep.subr.mxu0 0.0
    %233 = vmatpush2.msra.mxu0 0.0
    %234 = vmatprep.subr.mxu0 0.0
    %235 = vmatpush2.msra.mxu0 0.0
    %236 = vmatprep.subr.mxu0 0.0
    %237 = vmatpush2.msra.mxu0 0.0
    %238 = vmatprep.mubr.f32.mxu0 0.0
    %239 = vmatmul.mubr.f32.gmra.mxu0 %v172
    %v240 = vpop.f32.mrf.mxu0
    %v241 = vadd.f32 0.0, %v240
    %v242 = vpop.f32.mrf.mxu0
    %243 = vdwg.mxu0
    %v245 = vlaneseq
    %v246 = vshrl.u32 %v245, 7
    %v247 = vsub.s32 0, %v246
    %v248 = vrot.slane %v163, %v247
    %vm250 = vcmask 261120
    %v252 = vsel %vm250, %v241, 0
    %254 = vmatprep.subr.mxu0 0.0
    %255 = vmatpush1.msra.mxu0 0.0
    %256 = vmatprep.subr.mxu0 0.0
    %257 = vmatpush1.msra.mxu0 0.0
    %258 = vmatprep.subr.mxu0 0.0
    %259 = vmatpush1.msra.mxu0 0.0
    %260 = vmatprep.subr.mxu0 0.0
    %261 = vmatpush1.msra.mxu0 0.0
    %262 = vmatprep.subr.mxu0 0.0
    %263 = vmatpush1.msra.mxu0 0.0
    %264 = vmatprep.subr.mxu0 0.0
    %265 = vmatpush1.msra.mxu0 0.0
    %266 = vmatprep.subr.mxu0 0.0
    %267 = vmatpush1.msra.mxu0 0.0
    %268 = vmatprep.subr.mxu0 0.0
    %269 = vmatpush1.msra.mxu0 0.0
    %270 = vmatprep.subr.mxu0 0.0
    %271 = vmatpush1.msra.mxu0 0.0
    %272 = vmatprep.subr.mxu0 0.0
    %273 = vmatpush1.msra.mxu0 0.0
    %274 = vmatprep.subr.mxu0 0.0
    %275 = vmatpush1.msra.mxu0 0.0
    %276 = vmatprep.subr.mxu0 0.0
    %277 = vmatpush1.msra.mxu0 0.0
    %278 = vmatprep.subr.mxu0 0.0
    %279 = vmatpush1.msra.mxu0 %v162
    %280 = vmatprep.subr.mxu0 0.0
    %281 = vmatpush1.msra.mxu0 %v161
    %282 = vmatprep.subr.mxu0 0.0
    %283 = vmatpush1.msra.mxu0 %v160
    %284 = vmatprep.subr.mxu0 0.0
    %285 = vmatpush1.msra.mxu0 %v159
    %286 = vmatprep.subr.mxu0 0.0
    %287 = vmatpush2.msra.mxu0 0.0
    %288 = vmatprep.subr.mxu0 0.0
    %289 = vmatpush2.msra.mxu0 0.0
    %290 = vmatprep.subr.mxu0 0.0
    %291 = vmatpush2.msra.mxu0 0.0
    %292 = vmatprep.subr.mxu0 0.0
    %293 = vmatpush2.msra.mxu0 0.0
    %294 = vmatprep.subr.mxu0 0.0
    %295 = vmatpush2.msra.mxu0 0.0
    %296 = vmatprep.subr.mxu0 0.0
    %297 = vmatpush2.msra.mxu0 0.0
    %298 = vmatprep.subr.mxu0 0.0
    %299 = vmatpush2.msra.mxu0 0.0
    %300 = vmatprep.subr.mxu0 0.0
    %301 = vmatpush2.msra.mxu0 0.0
    %302 = vmatprep.subr.mxu0 0.0
    %303 = vmatpush2.msra.mxu0 0.0
    %304 = vmatprep.subr.mxu0 0.0
    %305 = vmatpush2.msra.mxu0 0.0
    %306 = vmatprep.subr.mxu0 0.0
    %307 = vmatpush2.msra.mxu0 0.0
    %308 = vmatprep.subr.mxu0 0.0
    %309 = vmatpush2.msra.mxu0 0.0
    %310 = vmatprep.subr.mxu0 0.0
    %311 = vmatpush2.msra.mxu0 0.0
    %312 = vmatprep.subr.mxu0 0.0
    %313 = vmatpush2.msra.mxu0 0.0
    %314 = vmatprep.subr.mxu0 0.0
    %315 = vmatpush2.msra.mxu0 0.0
    %316 = vmatprep.subr.mxu0 0.0
    %317 = vmatpush2.msra.mxu0 0.0
    %318 = vmatprep.mubr.f32.mxu0 0.0
    %319 = vmatmul.mubr.f32.gmra.mxu0 %v252
    %v320 = vpop.f32.mrf.mxu0
    %v321 = vadd.f32 %v248, %v320
    %v322 = vpop.f32.mrf.mxu0
    %323 = vdwg.mxu0
    %v324 = vmax.f32 %v321, 0.0
    %v326 = vlaneseq
    %v327 = vshrl.u32 %v326, 7
    %v328 = vsub.s32 0, %v327
    %v329 = vrot.slane %v168, %v328
    %v332 = vsel %vm250, %v324, 0
    %334 = vmatprep.subr.mxu0 0.0
    %335 = vmatpush1.msra.mxu0 0.0
    %336 = vmatprep.subr.mxu0 0.0
    %337 = vmatpush1.msra.mxu0 0.0
    %338 = vmatprep.subr.mxu0 0.0
    %339 = vmatpush1.msra.mxu0 0.0
    %340 = vmatprep.subr.mxu0 0.0
    %341 = vmatpush1.msra.mxu0 0.0
    %342 = vmatprep.subr.mxu0 0.0
    %343 = vmatpush1.msra.mxu0 0.0
    %344 = vmatprep.subr.mxu0 0.0
    %345 = vmatpush1.msra.mxu0 0.0
    %346 = vmatprep.subr.mxu0 0.0
    %347 = vmatpush1.msra.mxu0 0.0
    %348 = vmatprep.subr.mxu0 0.0
    %349 = vmatpush1.msra.mxu0 0.0
    %350 = vmatprep.subr.mxu0 0.0
    %351 = vmatpush1.msra.mxu0 0.0
    %352 = vmatprep.subr.mxu0 0.0
    %353 = vmatpush1.msra.mxu0 0.0
    %354 = vmatprep.subr.mxu0 0.0
    %355 = vmatpush1.msra.mxu0 0.0
    %356 = vmatprep.subr.mxu0 0.0
    %357 = vmatpush1.msra.mxu0 0.0
    %358 = vmatprep.subr.mxu0 0.0
    %359 = vmatpush1.msra.mxu0 %v167
    %360 = vmatprep.subr.mxu0 0.0
    %361 = vmatpush1.msra.mxu0 %v166
    %362 = vmatprep.subr.mxu0 0.0
    %363 = vmatpush1.msra.mxu0 %v165
    %364 = vmatprep.subr.mxu0 0.0
    %365 = vmatpush1.msra.mxu0 %v164
    %366 = vmatprep.subr.mxu0 0.0
    %367 = vmatpush2.msra.mxu0 0.0
    %368 = vmatprep.subr.mxu0 0.0
    %369 = vmatpush2.msra.mxu0 0.0
    %370 = vmatprep.subr.mxu0 0.0
    %371 = vmatpush2.msra.mxu0 0.0
    %372 = vmatprep.subr.mxu0 0.0
    %373 = vmatpush2.msra.mxu0 0.0
    %374 = vmatprep.subr.mxu0 0.0
    %375 = vmatpush2.msra.mxu0 0.0
    %376 = vmatprep.subr.mxu0 0.0
    %377 = vmatpush2.msra.mxu0 0.0
    %378 = vmatprep.subr.mxu0 0.0
    %379 = vmatpush2.msra.mxu0 0.0
    %380 = vmatprep.subr.mxu0 0.0
    %381 = vmatpush2.msra.mxu0 0.0
    %382 = vmatprep.subr.mxu0 0.0
    %383 = vmatpush2.msra.mxu0 0.0
    %384 = vmatprep.subr.mxu0 0.0
    %385 = vmatpush2.msra.mxu0 0.0
    %386 = vmatprep.subr.mxu0 0.0
    %387 = vmatpush2.msra.mxu0 0.0
    %388 = vmatprep.subr.mxu0 0.0
    %389 = vmatpush2.msra.mxu0 0.0
    %390 = vmatprep.subr.mxu0 0.0
    %391 = vmatpush2.msra.mxu0 0.0
    %392 = vmatprep.subr.mxu0 0.0
    %393 = vmatpush2.msra.mxu0 0.0
    %394 = vmatprep.subr.mxu0 0.0
    %395 = vmatpush2.msra.mxu0 0.0
    %396 = vmatprep.subr.mxu0 0.0
    %397 = vmatpush2.msra.mxu0 0.0
    %398 = vmatprep.mubr.f32.mxu0 0.0
    %399 = vmatmul.mubr.f32.gmra.mxu0 %v332
    %v400 = vpop.f32.mrf.mxu0
    %v401 = vadd.f32 %v329, %v400
    %v402 = vpop.f32.mrf.mxu0
    %403 = vdwg.mxu0
    %v404 = vmax.f32 %v401, 0.0
    %v405 = vld [vmem:[%s8] sm:$0xff]
    %v406 = vld [vmem:[%s8 + $0x8] sm:$0xff]
    %v407 = vld [vmem:[%s8 + $0x10] sm:$0xff]
    %v408 = vld [vmem:[%s8 + $0x18] sm:$0xff]
    %v409 = vld [vmem:[#allocation13] sm:$0x1]
    %v410 = vld [vmem:[%s10] sm:$0xff]
    %v411 = vld [vmem:[%s10 + $0x8] sm:$0xff]
    %v412 = vld [vmem:[%s10 + $0x10] sm:$0xff]
    %v413 = vld [vmem:[%s10 + $0x18] sm:$0xff]
    %v414 = vld [vmem:[%s11] sm:$0x1]
    %v415 = vld [vmem:[#allocation7] sm:$0xf]
    %vm416 = vcmask 64512
    %v418 = vsel %vm416, %v415, 0
    %420 = vmatprep.subr.mxu0 0.0
    %421 = vmatpush1.msra.mxu0 0.0
    %422 = vmatprep.subr.mxu0 0.0
    %423 = vmatpush1.msra.mxu0 0.0
    %424 = vmatprep.subr.mxu0 0.0
    %425 = vmatpush1.msra.mxu0 0.0
    %426 = vmatprep.subr.mxu0 0.0
    %427 = vmatpush1.msra.mxu0 0.0
    %428 = vmatprep.subr.mxu0 0.0
    %429 = vmatpush1.msra.mxu0 0.0
    %430 = vmatprep.subr.mxu0 0.0
    %431 = vmatpush1.msra.mxu0 0.0
    %432 = vmatprep.subr.mxu0 0.0
    %433 = vmatpush1.msra.mxu0 0.0
    %434 = vmatprep.subr.mxu0 0.0
    %435 = vmatpush1.msra.mxu0 0.0
    %436 = vmatprep.subr.mxu0 0.0
    %437 = vmatpush1.msra.mxu0 0.0
    %438 = vmatprep.subr.mxu0 0.0
    %439 = vmatpush1.msra.mxu0 0.0
    %440 = vmatprep.subr.mxu0 0.0
    %441 = vmatpush1.msra.mxu0 0.0
    %442 = vmatprep.subr.mxu0 0.0
    %443 = vmatpush1.msra.mxu0 0.0
    %444 = vmatprep.subr.mxu0 0.0
    %445 = vmatpush1.msra.mxu0 0.0
    %446 = vmatprep.subr.mxu0 0.0
    %447 = vmatpush1.msra.mxu0 0.0
    %448 = vmatprep.subr.mxu0 0.0
    %449 = vmatpush1.msra.mxu0 0.0
    %450 = vmatprep.subr.mxu0 0.0
    %451 = vmatpush1.msra.mxu0 %v404
    %452 = vmatprep.subr.mxu0 0.0
    %453 = vmatpush2.msra.mxu0 0.0
    %454 = vmatprep.subr.mxu0 0.0
    %455 = vmatpush2.msra.mxu0 0.0
    %456 = vmatprep.subr.mxu0 0.0
    %457 = vmatpush2.msra.mxu0 0.0
    %458 = vmatprep.subr.mxu0 0.0
    %459 = vmatpush2.msra.mxu0 0.0
    %460 = vmatprep.subr.mxu0 0.0
    %461 = vmatpush2.msra.mxu0 0.0
    %462 = vmatprep.subr.mxu0 0.0
    %463 = vmatpush2.msra.mxu0 0.0
    %464 = vmatprep.subr.mxu0 0.0
    %465 = vmatpush2.msra.mxu0 0.0
    %466 = vmatprep.subr.mxu0 0.0
    %467 = vmatpush2.msra.mxu0 0.0
    %468 = vmatprep.subr.mxu0 0.0
    %469 = vmatpush2.msra.mxu0 0.0
    %470 = vmatprep.subr.mxu0 0.0
    %471 = vmatpush2.msra.mxu0 0.0
    %472 = vmatprep.subr.mxu0 0.0
    %473 = vmatpush2.msra.mxu0 0.0
    %474 = vmatprep.subr.mxu0 0.0
    %475 = vmatpush2.msra.mxu0 0.0
    %476 = vmatprep.subr.mxu0 0.0
    %477 = vmatpush2.msra.mxu0 0.0
    %478 = vmatprep.subr.mxu0 0.0
    %479 = vmatpush2.msra.mxu0 0.0
    %480 = vmatprep.subr.mxu0 0.0
    %481 = vmatpush2.msra.mxu0 0.0
    %482 = vmatprep.subr.mxu0 0.0
    %483 = vmatpush2.msra.mxu0 0.0
    %484 = vmatprep.mubr.f32.mxu0 0.0
    %485 = vmatmul.mubr.f32.gmra.mxu0 %v418
    %v486 = vpop.f32.mrf.mxu0
    %v487 = vadd.f32 0.0, %v486
    %v488 = vpop.f32.mrf.mxu0
    %489 = vdwg.mxu0
    %v491 = vlaneseq
    %v492 = vshrl.u32 %v491, 7
    %v493 = vsub.s32 0, %v492
    %v494 = vrot.slane %v409, %v493
    %v497 = vsel %vm250, %v487, 0
    %499 = vmatprep.subr.mxu0 0.0
    %500 = vmatpush1.msra.mxu0 0.0
    %501 = vmatprep.subr.mxu0 0.0
    %502 = vmatpush1.msra.mxu0 0.0
    %503 = vmatprep.subr.mxu0 0.0
    %504 = vmatpush1.msra.mxu0 0.0
    %505 = vmatprep.subr.mxu0 0.0
    %506 = vmatpush1.msra.mxu0 0.0
    %507 = vmatprep.subr.mxu0 0.0
    %508 = vmatpush1.msra.mxu0 0.0
    %509 = vmatprep.subr.mxu0 0.0
    %510 = vmatpush1.msra.mxu0 0.0
    %511 = vmatprep.subr.mxu0 0.0
    %512 = vmatpush1.msra.mxu0 0.0
    %513 = vmatprep.subr.mxu0 0.0
    %514 = vmatpush1.msra.mxu0 0.0
    %515 = vmatprep.subr.mxu0 0.0
    %516 = vmatpush1.msra.mxu0 0.0
    %517 = vmatprep.subr.mxu0 0.0
    %518 = vmatpush1.msra.mxu0 0.0
    %519 = vmatprep.subr.mxu0 0.0
    %520 = vmatpush1.msra.mxu0 0.0
    %521 = vmatprep.subr.mxu0 0.0
    %522 = vmatpush1.msra.mxu0 0.0
    %523 = vmatprep.subr.mxu0 0.0
    %524 = vmatpush1.msra.mxu0 %v408
    %525 = vmatprep.subr.mxu0 0.0
    %526 = vmatpush1.msra.mxu0 %v407
    %527 = vmatprep.subr.mxu0 0.0
    %528 = vmatpush1.msra.mxu0 %v406
    %529 = vmatprep.subr.mxu0 0.0
    %530 = vmatpush1.msra.mxu0 %v405
    %531 = vmatprep.subr.mxu0 0.0
    %532 = vmatpush2.msra.mxu0 0.0
    %533 = vmatprep.subr.mxu0 0.0
    %534 = vmatpush2.msra.mxu0 0.0
    %535 = vmatprep.subr.mxu0 0.0
    %536 = vmatpush2.msra.mxu0 0.0
    %537 = vmatprep.subr.mxu0 0.0
    %538 = vmatpush2.msra.mxu0 0.0
    %539 = vmatprep.subr.mxu0 0.0
    %540 = vmatpush2.msra.mxu0 0.0
    %541 = vmatprep.subr.mxu0 0.0
    %542 = vmatpush2.msra.mxu0 0.0
    %543 = vmatprep.subr.mxu0 0.0
    %544 = vmatpush2.msra.mxu0 0.0
    %545 = vmatprep.subr.mxu0 0.0
    %546 = vmatpush2.msra.mxu0 0.0
    %547 = vmatprep.subr.mxu0 0.0
    %548 = vmatpush2.msra.mxu0 0.0
    %549 = vmatprep.subr.mxu0 0.0
    %550 = vmatpush2.msra.mxu0 0.0
    %551 = vmatprep.subr.mxu0 0.0
    %552 = vmatpush2.msra.mxu0 0.0
    %553 = vmatprep.subr.mxu0 0.0
    %554 = vmatpush2.msra.mxu0 0.0
    %555 = vmatprep.subr.mxu0 0.0
    %556 = vmatpush2.msra.mxu0 0.0
    %557 = vmatprep.subr.mxu0 0.0
    %558 = vmatpush2.msra.mxu0 0.0
    %559 = vmatprep.subr.mxu0 0.0
    %560 = vmatpush2.msra.mxu0 0.0
    %561 = vmatprep.subr.mxu0 0.0
    %562 = vmatpush2.msra.mxu0 0.0
    %563 = vmatprep.mubr.f32.mxu0 0.0
    %564 = vmatmul.mubr.f32.gmra.mxu0 %v497
    %v565 = vpop.f32.mrf.mxu0
    %v566 = vadd.f32 %v494, %v565
    %v567 = vpop.f32.mrf.mxu0
    %568 = vdwg.mxu0
    %v569 = vmax.f32 %v566, 0.0
    %v571 = vlaneseq
    %v572 = vshrl.u32 %v571, 7
    %v573 = vsub.s32 0, %v572
    %v574 = vrot.slane %v414, %v573
    %v577 = vsel %vm250, %v569, 0
    %579 = vmatprep.subr.mxu0 0.0
    %580 = vmatpush1.msra.mxu0 0.0
    %581 = vmatprep.subr.mxu0 0.0
    %582 = vmatpush1.msra.mxu0 0.0
    %583 = vmatprep.subr.mxu0 0.0
    %584 = vmatpush1.msra.mxu0 0.0
    %585 = vmatprep.subr.mxu0 0.0
    %586 = vmatpush1.msra.mxu0 0.0
    %587 = vmatprep.subr.mxu0 0.0
    %588 = vmatpush1.msra.mxu0 0.0
    %589 = vmatprep.subr.mxu0 0.0
    %590 = vmatpush1.msra.mxu0 0.0
    %591 = vmatprep.subr.mxu0 0.0
    %592 = vmatpush1.msra.mxu0 0.0
    %593 = vmatprep.subr.mxu0 0.0
    %594 = vmatpush1.msra.mxu0 0.0
    %595 = vmatprep.subr.mxu0 0.0
    %596 = vmatpush1.msra.mxu0 0.0
    %597 = vmatprep.subr.mxu0 0.0
    %598 = vmatpush1.msra.mxu0 0.0
    %599 = vmatprep.subr.mxu0 0.0
    %600 = vmatpush1.msra.mxu0 0.0
    %601 = vmatprep.subr.mxu0 0.0
    %602 = vmatpush1.msra.mxu0 0.0
    %603 = vmatprep.subr.mxu0 0.0
    %604 = vmatpush1.msra.mxu0 %v413
    %605 = vmatprep.subr.mxu0 0.0
    %606 = vmatpush1.msra.mxu0 %v412
    %607 = vmatprep.subr.mxu0 0.0
    %608 = vmatpush1.msra.mxu0 %v411
    %609 = vmatprep.subr.mxu0 0.0
    %610 = vmatpush1.msra.mxu0 %v410
    %611 = vmatprep.subr.mxu0 0.0
    %612 = vmatpush2.msra.mxu0 0.0
    %613 = vmatprep.subr.mxu0 0.0
    %614 = vmatpush2.msra.mxu0 0.0
    %615 = vmatprep.subr.mxu0 0.0
    %616 = vmatpush2.msra.mxu0 0.0
    %617 = vmatprep.subr.mxu0 0.0
    %618 = vmatpush2.msra.mxu0 0.0
    %619 = vmatprep.subr.mxu0 0.0
    %620 = vmatpush2.msra.mxu0 0.0
    %621 = vmatprep.subr.mxu0 0.0
    %622 = vmatpush2.msra.mxu0 0.0
    %623 = vmatprep.subr.mxu0 0.0
    %624 = vmatpush2.msra.mxu0 0.0
    %625 = vmatprep.subr.mxu0 0.0
    %626 = vmatpush2.msra.mxu0 0.0
    %627 = vmatprep.subr.mxu0 0.0
    %628 = vmatpush2.msra.mxu0 0.0
    %629 = vmatprep.subr.mxu0 0.0
    %630 = vmatpush2.msra.mxu0 0.0
    %631 = vmatprep.subr.mxu0 0.0
    %632 = vmatpush2.msra.mxu0 0.0
    %633 = vmatprep.subr.mxu0 0.0
    %634 = vmatpush2.msra.mxu0 0.0
    %635 = vmatprep.subr.mxu0 0.0
    %636 = vmatpush2.msra.mxu0 0.0
    %637 = vmatprep.subr.mxu0 0.0
    %638 = vmatpush2.msra.mxu0 0.0
    %639 = vmatprep.subr.mxu0 0.0
    %640 = vmatpush2.msra.mxu0 0.0
    %641 = vmatprep.subr.mxu0 0.0
    %642 = vmatpush2.msra.mxu0 0.0
    %643 = vmatprep.mubr.f32.mxu0 0.0
    %644 = vmatmul.mubr.f32.gmra.mxu0 %v577
    %v645 = vpop.f32.mrf.mxu0
    %v646 = vadd.f32 %v574, %v645
    %v647 = vpop.f32.mrf.mxu0
    %648 = vdwg.mxu0
    %v649 = vmax.f32 %v646, 0.0
    %v650 = vld [vmem:[%s12] sm:$0xff]
    %v651 = vld [vmem:[%s12 + $0x8] sm:$0xff]
    %v652 = vld [vmem:[%s12 + $0x10] sm:$0xff]
    %v653 = vld [vmem:[%s12 + $0x18] sm:$0xff]
    %v654 = vld [vmem:[%s13] sm:$0x1]
    %v655 = vld [vmem:[#allocation14] sm:$0xff]
    %v656 = vld [vmem:[#allocation14 + $0x8] sm:$0xff]
    %v657 = vld [vmem:[#allocation14 + $0x10] sm:$0xff]
    %v658 = vld [vmem:[#allocation14 + $0x18] sm:$0xff]
    %v659 = vld [vmem:[%s15] sm:$0x1]
    %v660 = vld [vmem:[#allocation8] sm:$0x3]
    %vm661 = vcmask 31744
    %v663 = vsel %vm661, %v660, 0
    %vm665 = vcmask 1043456
    %v667 = vsel %vm665, %v649, 0
    %669 = vmatprep.subr.mxu0 0.0
    %670 = vmatpush1.msra.mxu0 0.0
    %671 = vmatprep.subr.mxu0 0.0
    %672 = vmatpush1.msra.mxu0 0.0
    %673 = vmatprep.subr.mxu0 0.0
    %674 = vmatpush1.msra.mxu0 0.0
    %675 = vmatprep.subr.mxu0 0.0
    %676 = vmatpush1.msra.mxu0 0.0
    %677 = vmatprep.subr.mxu0 0.0
    %678 = vmatpush1.msra.mxu0 0.0
    %679 = vmatprep.subr.mxu0 0.0
    %680 = vmatpush1.msra.mxu0 0.0
    %681 = vmatprep.subr.mxu0 0.0
    %682 = vmatpush1.msra.mxu0 0.0
    %683 = vmatprep.subr.mxu0 0.0
    %684 = vmatpush1.msra.mxu0 0.0
    %685 = vmatprep.subr.mxu0 0.0
    %686 = vmatpush1.msra.mxu0 0.0
    %687 = vmatprep.subr.mxu0 0.0
    %688 = vmatpush1.msra.mxu0 0.0
    %689 = vmatprep.subr.mxu0 0.0
    %690 = vmatpush1.msra.mxu0 0.0
    %691 = vmatprep.subr.mxu0 0.0
    %692 = vmatpush1.msra.mxu0 0.0
    %693 = vmatprep.subr.mxu0 0.0
    %694 = vmatpush1.msra.mxu0 0.0
    %695 = vmatprep.subr.mxu0 0.0
    %696 = vmatpush1.msra.mxu0 0.0
    %697 = vmatprep.subr.mxu0 0.0
    %698 = vmatpush1.msra.mxu0 0.0
    %699 = vmatprep.subr.mxu0 0.0
    %700 = vmatpush1.msra.mxu0 %v667
    %701 = vmatprep.subr.mxu0 0.0
    %702 = vmatpush2.msra.mxu0 0.0
    %703 = vmatprep.subr.mxu0 0.0
    %704 = vmatpush2.msra.mxu0 0.0
    %705 = vmatprep.subr.mxu0 0.0
    %706 = vmatpush2.msra.mxu0 0.0
    %707 = vmatprep.subr.mxu0 0.0
    %708 = vmatpush2.msra.mxu0 0.0
    %709 = vmatprep.subr.mxu0 0.0
    %710 = vmatpush2.msra.mxu0 0.0
    %711 = vmatprep.subr.mxu0 0.0
    %712 = vmatpush2.msra.mxu0 0.0
    %713 = vmatprep.subr.mxu0 0.0
    %714 = vmatpush2.msra.mxu0 0.0
    %715 = vmatprep.subr.mxu0 0.0
    %716 = vmatpush2.msra.mxu0 0.0
    %717 = vmatprep.subr.mxu0 0.0
    %718 = vmatpush2.msra.mxu0 0.0
    %719 = vmatprep.subr.mxu0 0.0
    %720 = vmatpush2.msra.mxu0 0.0
    %721 = vmatprep.subr.mxu0 0.0
    %722 = vmatpush2.msra.mxu0 0.0
    %723 = vmatprep.subr.mxu0 0.0
    %724 = vmatpush2.msra.mxu0 0.0
    %725 = vmatprep.subr.mxu0 0.0
    %726 = vmatpush2.msra.mxu0 0.0
    %727 = vmatprep.subr.mxu0 0.0
    %728 = vmatpush2.msra.mxu0 0.0
    %729 = vmatprep.subr.mxu0 0.0
    %730 = vmatpush2.msra.mxu0 0.0
    %731 = vmatprep.subr.mxu0 0.0
    %732 = vmatpush2.msra.mxu0 0.0
    %733 = vmatprep.mubr.f32.mxu0 0.0
    %734 = vmatmul.mubr.f32.gmra.mxu0 %v663
    %v735 = vpop.f32.mrf.mxu0
    %v736 = vadd.f32 0.0, %v735
    %v737 = vpop.f32.mrf.mxu0
    %738 = vdwg.mxu0
    %v740 = vlaneseq
    %v741 = vshrl.u32 %v740, 7
    %v742 = vsub.s32 0, %v741
    %v743 = vrot.slane %v654, %v742
    %v746 = vsel %vm250, %v736, 0
    %748 = vmatprep.subr.mxu0 0.0
    %749 = vmatpush1.msra.mxu0 0.0
    %750 = vmatprep.subr.mxu0 0.0
    %751 = vmatpush1.msra.mxu0 0.0
    %752 = vmatprep.subr.mxu0 0.0
    %753 = vmatpush1.msra.mxu0 0.0
    %754 = vmatprep.subr.mxu0 0.0
    %755 = vmatpush1.msra.mxu0 0.0
    %756 = vmatprep.subr.mxu0 0.0
    %757 = vmatpush1.msra.mxu0 0.0
    %758 = vmatprep.subr.mxu0 0.0
    %759 = vmatpush1.msra.mxu0 0.0
    %760 = vmatprep.subr.mxu0 0.0
    %761 = vmatpush1.msra.mxu0 0.0
    %762 = vmatprep.subr.mxu0 0.0
    %763 = vmatpush1.msra.mxu0 0.0
    %764 = vmatprep.subr.mxu0 0.0
    %765 = vmatpush1.msra.mxu0 0.0
    %766 = vmatprep.subr.mxu0 0.0
    %767 = vmatpush1.msra.mxu0 0.0
    %768 = vmatprep.subr.mxu0 0.0
    %769 = vmatpush1.msra.mxu0 0.0
    %770 = vmatprep.subr.mxu0 0.0
    %771 = vmatpush1.msra.mxu0 0.0
    %772 = vmatprep.subr.mxu0 0.0
    %773 = vmatpush1.msra.mxu0 %v653
    %774 = vmatprep.subr.mxu0 0.0
    %775 = vmatpush1.msra.mxu0 %v652
    %776 = vmatprep.subr.mxu0 0.0
    %777 = vmatpush1.msra.mxu0 %v651
    %778 = vmatprep.subr.mxu0 0.0
    %779 = vmatpush1.msra.mxu0 %v650
    %780 = vmatprep.subr.mxu0 0.0
    %781 = vmatpush2.msra.mxu0 0.0
    %782 = vmatprep.subr.mxu0 0.0
    %783 = vmatpush2.msra.mxu0 0.0
    %784 = vmatprep.subr.mxu0 0.0
    %785 = vmatpush2.msra.mxu0 0.0
    %786 = vmatprep.subr.mxu0 0.0
    %787 = vmatpush2.msra.mxu0 0.0
    %788 = vmatprep.subr.mxu0 0.0
    %789 = vmatpush2.msra.mxu0 0.0
    %790 = vmatprep.subr.mxu0 0.0
    %791 = vmatpush2.msra.mxu0 0.0
    %792 = vmatprep.subr.mxu0 0.0
    %793 = vmatpush2.msra.mxu0 0.0
    %794 = vmatprep.subr.mxu0 0.0
    %795 = vmatpush2.msra.mxu0 0.0
    %796 = vmatprep.subr.mxu0 0.0
    %797 = vmatpush2.msra.mxu0 0.0
    %798 = vmatprep.subr.mxu0 0.0
    %799 = vmatpush2.msra.mxu0 0.0
    %800 = vmatprep.subr.mxu0 0.0
    %801 = vmatpush2.msra.mxu0 0.0
    %802 = vmatprep.subr.mxu0 0.0
    %803 = vmatpush2.msra.mxu0 0.0
    %804 = vmatprep.subr.mxu0 0.0
    %805 = vmatpush2.msra.mxu0 0.0
    %806 = vmatprep.subr.mxu0 0.0
    %807 = vmatpush2.msra.mxu0 0.0
    %808 = vmatprep.subr.mxu0 0.0
    %809 = vmatpush2.msra.mxu0 0.0
    %810 = vmatprep.subr.mxu0 0.0
    %811 = vmatpush2.msra.mxu0 0.0
    %812 = vmatprep.mubr.f32.mxu0 0.0
    %813 = vmatmul.mubr.f32.gmra.mxu0 %v746
    %v814 = vpop.f32.mrf.mxu0
    %v815 = vadd.f32 %v743, %v814
    %v816 = vpop.f32.mrf.mxu0
    %817 = vdwg.mxu0
    %v818 = vmax.f32 %v815, 0.0
    %v820 = vlaneseq
    %v821 = vshrl.u32 %v820, 7
    %v822 = vsub.s32 0, %v821
    %v823 = vrot.slane %v659, %v822
    %v826 = vsel %vm250, %v818, 0
    %828 = vmatprep.subr.mxu0 0.0
    %829 = vmatpush1.msra.mxu0 0.0
    %830 = vmatprep.subr.mxu0 0.0
    %831 = vmatpush1.msra.mxu0 0.0
    %832 = vmatprep.subr.mxu0 0.0
    %833 = vmatpush1.msra.mxu0 0.0
    %834 = vmatprep.subr.mxu0 0.0
    %835 = vmatpush1.msra.mxu0 0.0
    %836 = vmatprep.subr.mxu0 0.0
    %837 = vmatpush1.msra.mxu0 0.0
    %838 = vmatprep.subr.mxu0 0.0
    %839 = vmatpush1.msra.mxu0 0.0
    %840 = vmatprep.subr.mxu0 0.0
    %841 = vmatpush1.msra.mxu0 0.0
    %842 = vmatprep.subr.mxu0 0.0
    %843 = vmatpush1.msra.mxu0 0.0
    %844 = vmatprep.subr.mxu0 0.0
    %845 = vmatpush1.msra.mxu0 0.0
    %846 = vmatprep.subr.mxu0 0.0
    %847 = vmatpush1.msra.mxu0 0.0
    %848 = vmatprep.subr.mxu0 0.0
    %849 = vmatpush1.msra.mxu0 0.0
    %850 = vmatprep.subr.mxu0 0.0
    %851 = vmatpush1.msra.mxu0 0.0
    %852 = vmatprep.subr.mxu0 0.0
    %853 = vmatpush1.msra.mxu0 %v658
    %854 = vmatprep.subr.mxu0 0.0
    %855 = vmatpush1.msra.mxu0 %v657
    %856 = vmatprep.subr.mxu0 0.0
    %857 = vmatpush1.msra.mxu0 %v656
    %858 = vmatprep.subr.mxu0 0.0
    %859 = vmatpush1.msra.mxu0 %v655
    %860 = vmatprep.subr.mxu0 0.0
    %861 = vmatpush2.msra.mxu0 0.0
    %862 = vmatprep.subr.mxu0 0.0
    %863 = vmatpush2.msra.mxu0 0.0
    %864 = vmatprep.subr.mxu0 0.0
    %865 = vmatpush2.msra.mxu0 0.0
    %866 = vmatprep.subr.mxu0 0.0
    %867 = vmatpush2.msra.mxu0 0.0
    %868 = vmatprep.subr.mxu0 0.0
    %869 = vmatpush2.msra.mxu0 0.0
    %870 = vmatprep.subr.mxu0 0.0
    %871 = vmatpush2.msra.mxu0 0.0
    %872 = vmatprep.subr.mxu0 0.0
    %873 = vmatpush2.msra.mxu0 0.0
    %874 = vmatprep.subr.mxu0 0.0
    %875 = vmatpush2.msra.mxu0 0.0
    %876 = vmatprep.subr.mxu0 0.0
    %877 = vmatpush2.msra.mxu0 0.0
    %878 = vmatprep.subr.mxu0 0.0
    %879 = vmatpush2.msra.mxu0 0.0
    %880 = vmatprep.subr.mxu0 0.0
    %881 = vmatpush2.msra.mxu0 0.0
    %882 = vmatprep.subr.mxu0 0.0
    %883 = vmatpush2.msra.mxu0 0.0
    %884 = vmatprep.subr.mxu0 0.0
    %885 = vmatpush2.msra.mxu0 0.0
    %886 = vmatprep.subr.mxu0 0.0
    %887 = vmatpush2.msra.mxu0 0.0
    %888 = vmatprep.subr.mxu0 0.0
    %889 = vmatpush2.msra.mxu0 0.0
    %890 = vmatprep.subr.mxu0 0.0
    %891 = vmatpush2.msra.mxu0 0.0
    %892 = vmatprep.mubr.f32.mxu0 0.0
    %893 = vmatmul.mubr.f32.gmra.mxu0 %v826
    %v894 = vpop.f32.mrf.mxu0
    %v895 = vadd.f32 %v823, %v894
    %v896 = vpop.f32.mrf.mxu0
    %897 = vdwg.mxu0
    %v898 = vmax.f32 %v895, 0.0
    %v899 = vld [vmem:[%s16] sm:$0xff]
    %v900 = vld [vmem:[%s16 + $0x8] sm:$0xff]
    %v901 = vld [vmem:[%s16 + $0x10] sm:$0xff]
    %v902 = vld [vmem:[%s16 + $0x18] sm:$0xff]
    %v903 = vld [vmem:[%s16 + $0x20] sm:$0xff]
    %v904 = vld [vmem:[%s16 + $0x28] sm:$0xff]
    %v905 = vld [vmem:[%s16 + $0x30] sm:$0xff]
    %v906 = vld [vmem:[%s16 + $0x38] sm:$0xff]
    %v907 = vld [vmem:[%s16 + $0x40] sm:$0xff]
    %v908 = vld [vmem:[%s16 + $0x48] sm:$0xff]
    %v909 = vld [vmem:[%s16 + $0x50] sm:$0xff]
    %v910 = vld [vmem:[%s16 + $0x58] sm:$0xff]
    %v911 = vld [vmem:[%s16 + $0x60] sm:$0xff]
    %v912 = vld [vmem:[%s16 + $0x68] sm:$0xff]
    %v913 = vld [vmem:[%s16 + $0x70] sm:$0xff]
    %v914 = vld [vmem:[%s16 + $0x78] sm:$0xff]
    %v915 = vsel %vm250, %v157, 0.0
    %v916 = vrot.slane %v915, 4
    %v917 = vadd.f32 %v915, %v916
    %v918 = vrot.slane %v917, 2
    %v919 = vadd.f32 %v917, %v918
    %v920 = vrot.slane %v919, 1
    %v921 = vadd.f32 %v919, %v920
    %v922 = vsel %vm250, %v158, 0.0
    %v923 = vrot.slane %v922, 4
    %v924 = vadd.f32 %v922, %v923
    %v925 = vrot.slane %v924, 2
    %v926 = vadd.f32 %v924, %v925
    %v927 = vrot.slane %v926, 1
    %v928 = vadd.f32 %v926, %v927
    %vm929 = vcmask 1040384
    %v930 = vsel %vm929, %v921, %v928
    %vm931 = vcmask 257024
    %v932 = vsel %vm931, %v404, 0.0
    %v933 = vrot.slane %v932, 4
    %v934 = vadd.f32 %v932, %v933
    %v935 = vrot.slane %v934, 2
    %v936 = vadd.f32 %v934, %v935
    %v937 = vrot.slane %v936, 1
    %v938 = vadd.f32 %v936, %v937
    %v940 = vrot.slane %v404, 4
    %v942 = vsel %vm931, %v940, 0.0
    %v943 = vrot.slane %v942, 4
    %v944 = vadd.f32 %v942, %v943
    %v945 = vrot.slane %v944, 2
    %v946 = vadd.f32 %v944, %v945
    %v947 = vrot.slane %v946, 1
    %v948 = vadd.f32 %v946, %v947
    %v949 = vsel %vm929, %v938, %v948
    %v951 = vsel %vm250, %v949, 0
    %953 = vmatprep.subr.mxu0 0.0
    %954 = vmatpush1.msra.mxu0 0.0
    %955 = vmatprep.subr.mxu0 0.0
    %956 = vmatpush1.msra.mxu0 0.0
    %957 = vmatprep.subr.mxu0 0.0
    %958 = vmatpush1.msra.mxu0 0.0
    %959 = vmatprep.subr.mxu0 0.0
    %960 = vmatpush1.msra.mxu0 0.0
    %961 = vmatprep.subr.mxu0 0.0
    %962 = vmatpush1.msra.mxu0 0.0
    %963 = vmatprep.subr.mxu0 0.0
    %964 = vmatpush1.msra.mxu0 0.0
    %965 = vmatprep.subr.mxu0 0.0
    %966 = vmatpush1.msra.mxu0 0.0
    %967 = vmatprep.subr.mxu0 0.0
    %968 = vmatpush1.msra.mxu0 0.0
    %969 = vmatprep.subr.mxu0 0.0
    %970 = vmatpush1.msra.mxu0 0.0
    %971 = vmatprep.subr.mxu0 0.0
    %972 = vmatpush1.msra.mxu0 0.0
    %973 = vmatprep.subr.mxu0 0.0
    %974 = vmatpush1.msra.mxu0 0.0
    %975 = vmatprep.subr.mxu0 0.0
    %976 = vmatpush1.msra.mxu0 0.0
    %977 = vmatprep.subr.mxu0 0.0
    %978 = vmatpush1.msra.mxu0 %v906
    %979 = vmatprep.subr.mxu0 0.0
    %980 = vmatpush1.msra.mxu0 %v905
    %981 = vmatprep.subr.mxu0 0.0
    %982 = vmatpush1.msra.mxu0 %v904
    %983 = vmatprep.subr.mxu0 0.0
    %984 = vmatpush1.msra.mxu0 %v903
    %985 = vmatprep.subr.mxu0 0.0
    %986 = vmatpush2.msra.mxu0 0.0
    %987 = vmatprep.subr.mxu0 0.0
    %988 = vmatpush2.msra.mxu0 0.0
    %989 = vmatprep.subr.mxu0 0.0
    %990 = vmatpush2.msra.mxu0 0.0
    %991 = vmatprep.subr.mxu0 0.0
    %992 = vmatpush2.msra.mxu0 0.0
    %993 = vmatprep.subr.mxu0 0.0
    %994 = vmatpush2.msra.mxu0 0.0
    %995 = vmatprep.subr.mxu0 0.0
    %996 = vmatpush2.msra.mxu0 0.0
    %997 = vmatprep.subr.mxu0 0.0
    %998 = vmatpush2.msra.mxu0 0.0
    %999 = vmatprep.subr.mxu0 0.0
    %1000 = vmatpush2.msra.mxu0 0.0
    %1001 = vmatprep.subr.mxu0 0.0
    %1002 = vmatpush2.msra.mxu0 0.0
    %1003 = vmatprep.subr.mxu0 0.0
    %1004 = vmatpush2.msra.mxu0 0.0
    %1005 = vmatprep.subr.mxu0 0.0
    %1006 = vmatpush2.msra.mxu0 0.0
    %1007 = vmatprep.subr.mxu0 0.0
    %1008 = vmatpush2.msra.mxu0 0.0
    %1009 = vmatprep.subr.mxu0 0.0
    %1010 = vmatpush2.msra.mxu0 0.0
    %1011 = vmatprep.subr.mxu0 0.0
    %1012 = vmatpush2.msra.mxu0 0.0
    %1013 = vmatprep.subr.mxu0 0.0
    %1014 = vmatpush2.msra.mxu0 0.0
    %1015 = vmatprep.subr.mxu0 0.0
    %1016 = vmatpush2.msra.mxu0 0.0
    %1017 = vmatprep.mubr.f32.mxu0 0.0
    %1018 = vmatmul.mubr.f32.gmra.mxu0 %v951
    %v1019 = vpop.f32.mrf.mxu0
    %v1020 = vadd.f32 0.0, %v1019
    %v1021 = vpop.f32.mrf.mxu0
    %1022 = vdwg.mxu0
    %v1024 = vsel %vm250, %v930, 0
    %1026 = vmatprep.subr.mxu0 0.0
    %1027 = vmatpush1.msra.mxu0 0.0
    %1028 = vmatprep.subr.mxu0 0.0
    %1029 = vmatpush1.msra.mxu0 0.0
    %1030 = vmatprep.subr.mxu0 0.0
    %1031 = vmatpush1.msra.mxu0 0.0
    %1032 = vmatprep.subr.mxu0 0.0
    %1033 = vmatpush1.msra.mxu0 0.0
    %1034 = vmatprep.subr.mxu0 0.0
    %1035 = vmatpush1.msra.mxu0 0.0
    %1036 = vmatprep.subr.mxu0 0.0
    %1037 = vmatpush1.msra.mxu0 0.0
    %1038 = vmatprep.subr.mxu0 0.0
    %1039 = vmatpush1.msra.mxu0 0.0
    %1040 = vmatprep.subr.mxu0 0.0
    %1041 = vmatpush1.msra.mxu0 0.0
    %1042 = vmatprep.subr.mxu0 0.0
    %1043 = vmatpush1.msra.mxu0 0.0
    %1044 = vmatprep.subr.mxu0 0.0
    %1045 = vmatpush1.msra.mxu0 0.0
    %1046 = vmatprep.subr.mxu0 0.0
    %1047 = vmatpush1.msra.mxu0 0.0
    %1048 = vmatprep.subr.mxu0 0.0
    %1049 = vmatpush1.msra.mxu0 0.0
    %1050 = vmatprep.subr.mxu0 0.0
    %1051 = vmatpush1.msra.mxu0 %v902
    %1052 = vmatprep.subr.mxu0 0.0
    %1053 = vmatpush1.msra.mxu0 %v901
    %1054 = vmatprep.subr.mxu0 0.0
    %1055 = vmatpush1.msra.mxu0 %v900
    %1056 = vmatprep.subr.mxu0 0.0
    %1057 = vmatpush1.msra.mxu0 %v899
    %1058 = vmatprep.subr.mxu0 0.0
    %1059 = vmatpush2.msra.mxu0 0.0
    %1060 = vmatprep.subr.mxu0 0.0
    %1061 = vmatpush2.msra.mxu0 0.0
    %1062 = vmatprep.subr.mxu0 0.0
    %1063 = vmatpush2.msra.mxu0 0.0
    %1064 = vmatprep.subr.mxu0 0.0
    %1065 = vmatpush2.msra.mxu0 0.0
    %1066 = vmatprep.subr.mxu0 0.0
    %1067 = vmatpush2.msra.mxu0 0.0
    %1068 = vmatprep.subr.mxu0 0.0
    %1069 = vmatpush2.msra.mxu0 0.0
    %1070 = vmatprep.subr.mxu0 0.0
    %1071 = vmatpush2.msra.mxu0 0.0
    %1072 = vmatprep.subr.mxu0 0.0
    %1073 = vmatpush2.msra.mxu0 0.0
    %1074 = vmatprep.subr.mxu0 0.0
    %1075 = vmatpush2.msra.mxu0 0.0
    %1076 = vmatprep.subr.mxu0 0.0
    %1077 = vmatpush2.msra.mxu0 0.0
    %1078 = vmatprep.subr.mxu0 0.0
    %1079 = vmatpush2.msra.mxu0 0.0
    %1080 = vmatprep.subr.mxu0 0.0
    %1081 = vmatpush2.msra.mxu0 0.0
    %1082 = vmatprep.subr.mxu0 0.0
    %1083 = vmatpush2.msra.mxu0 0.0
    %1084 = vmatprep.subr.mxu0 0.0
    %1085 = vmatpush2.msra.mxu0 0.0
    %1086 = vmatprep.subr.mxu0 0.0
    %1087 = vmatpush2.msra.mxu0 0.0
    %1088 = vmatprep.subr.mxu0 0.0
    %1089 = vmatpush2.msra.mxu0 0.0
    %1090 = vmatprep.mubr.f32.mxu0 0.0
    %1091 = vmatmul.mubr.f32.gmra.mxu0 %v1024
    %v1092 = vpop.f32.mrf.mxu0
    %v1093 = vadd.f32 %v1020, %v1092
    %v1094 = vpop.f32.mrf.mxu0
    %1095 = vdwg.mxu0
    %vm1096 = vcmask 254976
    %v1097 = vsel %vm1096, %v649, 0.0
    %v1098 = vrot.slane %v1097, 4
    %v1099 = vadd.f32 %v1097, %v1098
    %v1100 = vrot.slane %v1099, 2
    %v1101 = vadd.f32 %v1099, %v1100
    %v1102 = vrot.slane %v1101, 1
    %v1103 = vadd.f32 %v1101, %v1102
    %v1104 = vrot.slane %v649, 2
    %v1106 = vsel %vm1096, %v1104, 0.0
    %v1107 = vrot.slane %v1106, 4
    %v1108 = vadd.f32 %v1106, %v1107
    %v1109 = vrot.slane %v1108, 2
    %v1110 = vadd.f32 %v1108, %v1109
    %v1111 = vrot.slane %v1110, 1
    %v1112 = vadd.f32 %v1110, %v1111
    %v1113 = vsel %vm929, %v1103, %v1112
    %v1115 = vsel %vm250, %v1113, 0
    %1117 = vmatprep.subr.mxu0 0.0
    %1118 = vmatpush1.msra.mxu0 0.0
    %1119 = vmatprep.subr.mxu0 0.0
    %1120 = vmatpush1.msra.mxu0 0.0
    %1121 = vmatprep.subr.mxu0 0.0
    %1122 = vmatpush1.msra.mxu0 0.0
    %1123 = vmatprep.subr.mxu0 0.0
    %1124 = vmatpush1.msra.mxu0 0.0
    %1125 = vmatprep.subr.mxu0 0.0
    %1126 = vmatpush1.msra.mxu0 0.0
    %1127 = vmatprep.subr.mxu0 0.0
    %1128 = vmatpush1.msra.mxu0 0.0
    %1129 = vmatprep.subr.mxu0 0.0
    %1130 = vmatpush1.msra.mxu0 0.0
    %1131 = vmatprep.subr.mxu0 0.0
    %1132 = vmatpush1.msra.mxu0 0.0
    %1133 = vmatprep.subr.mxu0 0.0
    %1134 = vmatpush1.msra.mxu0 0.0
    %1135 = vmatprep.subr.mxu0 0.0
    %1136 = vmatpush1.msra.mxu0 0.0
    %1137 = vmatprep.subr.mxu0 0.0
    %1138 = vmatpush1.msra.mxu0 0.0
    %1139 = vmatprep.subr.mxu0 0.0
    %1140 = vmatpush1.msra.mxu0 0.0
    %1141 = vmatprep.subr.mxu0 0.0
    %1142 = vmatpush1.msra.mxu0 %v910
    %1143 = vmatprep.subr.mxu0 0.0
    %1144 = vmatpush1.msra.mxu0 %v909
    %1145 = vmatprep.subr.mxu0 0.0
    %1146 = vmatpush1.msra.mxu0 %v908
    %1147 = vmatprep.subr.mxu0 0.0
    %1148 = vmatpush1.msra.mxu0 %v907
    %1149 = vmatprep.subr.mxu0 0.0
    %1150 = vmatpush2.msra.mxu0 0.0
    %1151 = vmatprep.subr.mxu0 0.0
    %1152 = vmatpush2.msra.mxu0 0.0
    %1153 = vmatprep.subr.mxu0 0.0
    %1154 = vmatpush2.msra.mxu0 0.0
    %1155 = vmatprep.subr.mxu0 0.0
    %1156 = vmatpush2.msra.mxu0 0.0
    %1157 = vmatprep.subr.mxu0 0.0
    %1158 = vmatpush2.msra.mxu0 0.0
    %1159 = vmatprep.subr.mxu0 0.0
    %1160 = vmatpush2.msra.mxu0 0.0
    %1161 = vmatprep.subr.mxu0 0.0
    %1162 = vmatpush2.msra.mxu0 0.0
    %1163 = vmatprep.subr.mxu0 0.0
    %1164 = vmatpush2.msra.mxu0 0.0
    %1165 = vmatprep.subr.mxu0 0.0
    %1166 = vmatpush2.msra.mxu0 0.0
    %1167 = vmatprep.subr.mxu0 0.0
    %1168 = vmatpush2.msra.mxu0 0.0
    %1169 = vmatprep.subr.mxu0 0.0
    %1170 = vmatpush2.msra.mxu0 0.0
    %1171 = vmatprep.subr.mxu0 0.0
    %1172 = vmatpush2.msra.mxu0 0.0
    %1173 = vmatprep.subr.mxu0 0.0
    %1174 = vmatpush2.msra.mxu0 0.0
    %1175 = vmatprep.subr.mxu0 0.0
    %1176 = vmatpush2.msra.mxu0 0.0
    %1177 = vmatprep.subr.mxu0 0.0
    %1178 = vmatpush2.msra.mxu0 0.0
    %1179 = vmatprep.subr.mxu0 0.0
    %1180 = vmatpush2.msra.mxu0 0.0
    %1181 = vmatprep.mubr.f32.mxu0 0.0
    %1182 = vmatmul.mubr.f32.gmra.mxu0 %v1115
    %v1183 = vpop.f32.mrf.mxu0
    %v1184 = vadd.f32 0.0, %v1183
    %v1185 = vpop.f32.mrf.mxu0
    %1186 = vdwg.mxu0
    %v1187 = vadd.f32 %v1093, %v1184
    %v1188 = vadd.f32 %v898, 0.0
    %v1190 = vsel %vm250, %v1188, 0
    %1192 = vmatprep.subr.mxu0 0.0
    %1193 = vmatpush1.msra.mxu0 0.0
    %1194 = vmatprep.subr.mxu0 0.0
    %1195 = vmatpush1.msra.mxu0 0.0
    %1196 = vmatprep.subr.mxu0 0.0
    %1197 = vmatpush1.msra.mxu0 0.0
    %1198 = vmatprep.subr.mxu0 0.0
    %1199 = vmatpush1.msra.mxu0 0.0
    %1200 = vmatprep.subr.mxu0 0.0
    %1201 = vmatpush1.msra.mxu0 0.0
    %1202 = vmatprep.subr.mxu0 0.0
    %1203 = vmatpush1.msra.mxu0 0.0
    %1204 = vmatprep.subr.mxu0 0.0
    %1205 = vmatpush1.msra.mxu0 0.0
    %1206 = vmatprep.subr.mxu0 0.0
    %1207 = vmatpush1.msra.mxu0 0.0
    %1208 = vmatprep.subr.mxu0 0.0
    %1209 = vmatpush1.msra.mxu0 0.0
    %1210 = vmatprep.subr.mxu0 0.0
    %1211 = vmatpush1.msra.mxu0 0.0
    %1212 = vmatprep.subr.mxu0 0.0
    %1213 = vmatpush1.msra.mxu0 0.0
    %1214 = vmatprep.subr.mxu0 0.0
    %1215 = vmatpush1.msra.mxu0 0.0
    %1216 = vmatprep.subr.mxu0 0.0
    %1217 = vmatpush1.msra.mxu0 %v914
    %1218 = vmatprep.subr.mxu0 0.0
    %1219 = vmatpush1.msra.mxu0 %v913
    %1220 = vmatprep.subr.mxu0 0.0
    %1221 = vmatpush1.msra.mxu0 %v912
    %1222 = vmatprep.subr.mxu0 0.0
    %1223 = vmatpush1.msra.mxu0 %v911
    %1224 = vmatprep.subr.mxu0 0.0
    %1225 = vmatpush2.msra.mxu0 0.0
    %1226 = vmatprep.subr.mxu0 0.0
    %1227 = vmatpush2.msra.mxu0 0.0
    %1228 = vmatprep.subr.mxu0 0.0
    %1229 = vmatpush2.msra.mxu0 0.0
    %1230 = vmatprep.subr.mxu0 0.0
    %1231 = vmatpush2.msra.mxu0 0.0
    %1232 = vmatprep.subr.mxu0 0.0
    %1233 = vmatpush2.msra.mxu0 0.0
    %1234 = vmatprep.subr.mxu0 0.0
    %1235 = vmatpush2.msra.mxu0 0.0
    %1236 = vmatprep.subr.mxu0 0.0
    %1237 = vmatpush2.msra.mxu0 0.0
    %1238 = vmatprep.subr.mxu0 0.0
    %1239 = vmatpush2.msra.mxu0 0.0
    %1240 = vmatprep.subr.mxu0 0.0
    %1241 = vmatpush2.msra.mxu0 0.0
    %1242 = vmatprep.subr.mxu0 0.0
    %1243 = vmatpush2.msra.mxu0 0.0
    %1244 = vmatprep.subr.mxu0 0.0
    %1245 = vmatpush2.msra.mxu0 0.0
    %1246 = vmatprep.subr.mxu0 0.0
    %1247 = vmatpush2.msra.mxu0 0.0
    %1248 = vmatprep.subr.mxu0 0.0
    %1249 = vmatpush2.msra.mxu0 0.0
    %1250 = vmatprep.subr.mxu0 0.0
    %1251 = vmatpush2.msra.mxu0 0.0
    %1252 = vmatprep.subr.mxu0 0.0
    %1253 = vmatpush2.msra.mxu0 0.0
    %1254 = vmatprep.subr.mxu0 0.0
    %1255 = vmatpush2.msra.mxu0 0.0
    %1256 = vmatprep.mubr.f32.mxu0 0.0
    %1257 = vmatmul.mubr.f32.gmra.mxu0 %v1190
    %v1258 = vpop.f32.mrf.mxu0
    %v1259 = vadd.f32 0.0, %v1258
    %v1260 = vpop.f32.mrf.mxu0
    %1261 = vdwg.mxu0
    %v1262 = vadd.f32 %v1187, %v1259
    %v1263 = vld [vmem:[%s17] sm:$0x1]
    %v1265 = vlaneseq
    %v1266 = vshrl.u32 %v1265, 7
    %v1267 = vsub.s32 0, %v1266
    %v1268 = vrot.slane %v1263, %v1267
    %v1270 = vadd.f32 %v1262, %v1268
    %vm1271 = vcmask 123904
    %1272 = vst.msk [vmem:[#allocation16] sm:$0x3] %vm1271, %v1270
    // Predicated region
    $region106: #{tpu_custom_call.1} parent=1 // pred_check
      _
    $region107: #{tpu_custom_call.1} parent=1 // pred_check_branch
      %1274 = sbr.rel (0) target = $region109
    $region108: #{tpu_custom_call.1} parent=1 // pred_region
      %s1276 = ssub.s32 32, 32
      %1277 = vsyncadd [#allocation4], %s1276
      %s1279 = sshll.u32 [#allocation16], 4
      %s1280 = int_to_ptr.vmem [resolvable:$true] %s1279
      %1282 = dma.vmem_to_hbm [thread:$0]  %s1280, 32, %s18, [#allocation4]
    $region109: #{tpu_custom_call.1} parent=1 // pred_fallthru
      _
    // Predicated region
    $region110: #{tpu_custom_call.1} parent=1 // pred_check
      _
    $region111: #{tpu_custom_call.1} parent=1 // pred_check_branch
      %1284 = sbr.rel (0) target = $region113
    $region112: #{tpu_custom_call.1} parent=1 // pred_region
      %1285 = dma.done [#allocation4], 32
    $region113: #{tpu_custom_call.1} parent=1 // pred_fallthru
      _
    %1286 = vsyncpa [#allocation3], 1
    %1287 = vsyncpa [#allocation6], 1
    %1288 = vsyncpa [#allocation9], 1
    %1289 = vsyncpa [#allocation12], 1
    %1290 = vsyncpa [#allocation15], 1
    %1291 = vsyncpa [#allocation4], 1

</llo_original>
